<compile_context>
chip_gen: v6e
topology: v6e:2x2x1
jax: 0.10.0
libtpu: 0.0.40
codegen_flags: <defaults>
</compile_context>

<pallas_src>
import functools

import numpy as np
import jax
import jax.numpy as jnp
from jax.experimental import pallas as pl
from jax.experimental.pallas import tpu as pltpu


# ----------------------------------------------------------------------------
# kernel_pos buffer: FPS over a dense grid inside the unit ball (deterministic,
# random_start=False -> start from point 0). numpy replacement of
# torch_cluster.fps used by compute_ball_positions.
# ----------------------------------------------------------------------------
def _farthest_point_sampling(points, k):
    sel = np.zeros(k, dtype=np.int64)
    sel[0] = 0
    dist = np.linalg.norm(points - points[0], axis=1)
    for i in range(1, k):
        sel[i] = int(np.argmax(dist))
        dist = np.minimum(dist, np.linalg.norm(points - points[sel[i]], axis=1))
    return sel


def compute_ball_positions(num_kernel_points, grid_res=100):
    lin = np.linspace(-1.0, 1.0, grid_res, dtype=np.float32)
    X, Y, Z = np.meshgrid(lin, lin, lin, indexing="ij")
    pts = np.stack([X, Y, Z], axis=-1).reshape(-1, 3)
    pts = pts[np.linalg.norm(pts, axis=-1) <= 1.0]
    idx = _farthest_point_sampling(pts, num_kernel_points)
    return pts[idx]  # [K, 3]


# ----------------------------------------------------------------------------
# Pallas kernel 1: per-edge messages (pre-MXU alpha formulation).
#   xk[:, k*C_in:(k+1)*C_in] = alpha[:, k] * xe         (f32, cast to bf16 once)
#   msg = xk @ W2                                       one deep MXU matmul
# W2 is kernel_weights laid out as [K*C_in, C_pad] in the wrapper.
# ----------------------------------------------------------------------------
def message_kernel(xe_ref, alpha_ref, w2_ref, out_ref, xk_ref):
    c_in = xe_ref.shape[1]
    num_k = alpha_ref.shape[1]

    xe = xe_ref[...].astype(jnp.float32)          # [E_blk, C_in]
    alpha = alpha_ref[...]                        # [E_blk, K] f32

    # Build the scaled, K-stacked LHS in f32 scratch (single bf16 cast below).
    for k in range(num_k):                        # K small & static
        xk_ref[:, k * c_in:(k + 1) * c_in] = alpha[:, k:k + 1] * xe

    out_ref[...] = jnp.dot(
        xk_ref[...].astype(jnp.bfloat16), w2_ref[...],
        preferred_element_type=jnp.float32).astype(out_ref.dtype)


# ----------------------------------------------------------------------------
# Pallas kernel 2a: BatchNorm1d batch statistics, two-pass (PyTorch-style),
# tiled over row tiles (reduction axis), channel tiles parallel.
#   pass 0: sum(x)            -> mean            (padded rows are zeros)
#   pass 1: sum((x-mean)^2)   -> var             (padded rows masked)
# Emits fused affine: scale = gamma*rstd, shift = beta - mean*gamma*rstd.
# ----------------------------------------------------------------------------
def bn_stats_kernel(q_ref, gamma_ref, beta_ref, scale_ref, shift_ref,
                    acc_ref, mean_ref, *, m_count, m_tile, eps=1e-5):
    p = pl.program_id(1)            # 0: mean pass, 1: centered variance pass
    i = pl.program_id(2)            # row tile (reduction axis)
    last = pl.num_programs(2) - 1
    inv_m = 1.0 / m_count

    @pl.when(i == 0)
    def _init():
        acc_ref[...] = jnp.zeros_like(acc_ref)

    q = q_ref[...]                  # [m_tile, lane] f32

    @pl.when(p == 0)
    def _accum_sum():
        acc_ref[...] += jnp.sum(q, axis=0, keepdims=True)

    @pl.when(p == 1)
    def _accum_sq():
        row = i * m_tile + jax.lax.broadcasted_iota(jnp.int32, q.shape, 0)
        d = jnp.where(row < m_count, q - mean_ref[...], 0.0)
        acc_ref[...] += jnp.sum(d * d, axis=0, keepdims=True)

    @pl.when(jnp.logical_and(p == 0, i == last))
    def _finalize_mean():
        mean_ref[...] = acc_ref[...] * inv_m

    @pl.when(jnp.logical_and(p == 1, i == last))
    def _finalize_affine():
        var = acc_ref[...] * inv_m
        rstd = jax.lax.rsqrt(var + eps)
        g = gamma_ref[...]
        scale_ref[...] = g * rstd
        shift_ref[...] = beta_ref[...] - mean_ref[...] * g * rstd


# ----------------------------------------------------------------------------
# Pallas kernel 2b: apply the fused BatchNorm affine, fully tiled/parallel.
# ----------------------------------------------------------------------------
def bn_apply_kernel(q_ref, scale_ref, shift_ref, out_ref):
    out_ref[...] = q_ref[...] * scale_ref[...] + shift_ref[...]


# ----------------------------------------------------------------------------
# Wrapper: glue (gather / geometry / top-A weights / segment mean) in JAX,
# heavy per-edge compute and the normalization in Pallas.
# ----------------------------------------------------------------------------
def message_passing_block_forward(ref_bxyz, ref_feat, query_bxyz, e_ref, e_query,
                                  kernel_pos, kernel_weights, gamma, beta,
                                  num_act_kernels, *, e_block=2048, m_block=1024,
                                  lane=128):
    E = e_ref.shape[0]
    M = query_bxyz.shape[0]
    K, C_in, C_out = kernel_weights.shape

    # --- glue: gather edge features + geometry + top-A inverse-distance weights
    xe = ref_feat[e_ref].astype(jnp.bfloat16)                          # [E, C_in]
    rel = ref_bxyz[e_ref, 1:4] - query_bxyz[e_query, 1:4]              # [E, 3]
    d = jnp.linalg.norm(rel[:, None, :] - kernel_pos[None, :, :], axis=-1)
    neg_top, idx = jax.lax.top_k(-d, num_act_kernels)                  # A nearest
    w = 1.0 / (-neg_top + 1e-8)
    w = w / jnp.sum(w, axis=-1, keepdims=True)
    alpha = jnp.zeros((E, K), jnp.float32).at[
        jnp.arange(E)[:, None], idx].set(w)                            # [E, K]

    # --- padding: lane-dense C_out, edge dim rounded to the tile (bf16 -> 16)
    c_pad = ((C_out + lane - 1) // lane) * lane
    if E < e_block:
        e_block = max(16, ((E + 15) // 16) * 16)
    e_pad = ((E + e_block - 1) // e_block) * e_block

    xe_p = jnp.zeros((e_pad, C_in), jnp.bfloat16).at[:E].set(xe)
    alpha_p = jnp.zeros((e_pad, K), jnp.float32).at[:E].set(alpha)

    # kernel_weights [K, C_in, C_out] -> W2 [K*C_in, C_pad] (bf16, zero-padded)
    w2 = jnp.zeros((K * C_in, c_pad), jnp.float32).at[:, :C_out].set(
        kernel_weights.reshape(K * C_in, C_out).astype(jnp.float32)
    ).astype(jnp.bfloat16)

    # --- Pallas: per-edge messages, gridded over edge tiles (pipelined DMA,
    #     'parallel' so v7x shards tiles across its two TensorCores).
    msg = pl.pallas_call(
        message_kernel,
        out_shape=jax.ShapeDtypeStruct((e_pad, c_pad), jnp.bfloat16),
        grid=(e_pad // e_block,),
        in_specs=[
            pl.BlockSpec((e_block, C_in), lambda i: (i, 0)),
            pl.BlockSpec((e_block, K), lambda i: (i, 0)),
            pl.BlockSpec((K * C_in, c_pad), lambda i: (0, 0)),  # constant weight
        ],
        out_specs=pl.BlockSpec((e_block, c_pad), lambda i: (i, 0)),
        scratch_shapes=[pltpu.VMEM((e_block, K * C_in), jnp.float32)],
        compiler_params=pltpu.CompilerParams(
            dimension_semantics=("parallel",),
            vmem_limit_bytes=32 * 1024 * 1024),
    )(xe_p, alpha_p, w2)

    # --- glue: sparse 'mean' aggregation edges -> queries, f32 accumulation.
    # TODO(synk): replace the XLA scatter-add with an in-Pallas CSR aggregation
    #             (sorted e_query + scalar-prefetched offsets) for large E.
    msg = msg[:E, :C_out].astype(jnp.float32)
    seg_sum = jax.ops.segment_sum(msg, e_query, num_segments=M)
    cnt = jax.ops.segment_sum(jnp.ones((E,), jnp.float32), e_query, num_segments=M)
    qf = seg_sum / jnp.maximum(cnt, 1.0)[:, None]                      # [M, C_out]

    # --- Pallas: BatchNorm1d (training-mode batch stats), tiled over rows.
    if M < m_block:
        m_block = max(8, ((M + 7) // 8) * 8)
    m_pad = ((M + m_block - 1) // m_block) * m_block
    qf_p = jnp.zeros((m_pad, c_pad), jnp.float32).at[:M, :C_out].set(qf)
    gamma_p = jnp.zeros((1, c_pad), jnp.float32).at[0, :C_out].set(
        gamma.astype(jnp.float32))
    beta_p = jnp.zeros((1, c_pad), jnp.float32).at[0, :C_out].set(
        beta.astype(jnp.float32))

    c_tiles = c_pad // lane
    m_tiles = m_pad // m_block

    scale, shift = pl.pallas_call(
        functools.partial(bn_stats_kernel, m_count=int(M), m_tile=m_block,
                          eps=1e-5),
        out_shape=(jax.ShapeDtypeStruct((1, c_pad), jnp.float32),
                   jax.ShapeDtypeStruct((1, c_pad), jnp.float32)),
        grid=(c_tiles, 2, m_tiles),
        in_specs=[
            pl.BlockSpec((m_block, lane), lambda j, p, i: (i, j)),
            pl.BlockSpec((1, lane), lambda j, p, i: (0, j)),
            pl.BlockSpec((1, lane), lambda j, p, i: (0, j)),
        ],
        out_specs=[
            pl.BlockSpec((1, lane), lambda j, p, i: (0, j)),
            pl.BlockSpec((1, lane), lambda j, p, i: (0, j)),
        ],
        scratch_shapes=[pltpu.VMEM((1, lane), jnp.float32),
                        pltpu.VMEM((1, lane), jnp.float32)],
        compiler_params=pltpu.CompilerParams(
            dimension_semantics=("parallel", "arbitrary", "arbitrary"),
            vmem_limit_bytes=32 * 1024 * 1024),
    )(qf_p, gamma_p, beta_p)

    out = pl.pallas_call(
        bn_apply_kernel,
        out_shape=jax.ShapeDtypeStruct((m_pad, c_pad), jnp.float32),
        grid=(m_tiles, c_tiles),
        in_specs=[
            pl.BlockSpec((m_block, lane), lambda i, j: (i, j)),
            pl.BlockSpec((1, lane), lambda i, j: (0, j)),
            pl.BlockSpec((1, lane), lambda i, j: (0, j)),
        ],
        out_specs=pl.BlockSpec((m_block, lane), lambda i, j: (i, j)),
        compiler_params=pltpu.CompilerParams(
            dimension_semantics=("parallel", "parallel"),
            vmem_limit_bytes=32 * 1024 * 1024),
    )(qf_p, scale, shift)

    return out[:M, :C_out]


# ----------------------------------------------------------------------------
# Pure-JAX reference (same math, mirroring the kernel's bf16 storage points
# with f32 accumulation) for a correctness check.
# ----------------------------------------------------------------------------
def reference_forward(ref_bxyz, ref_feat, query_bxyz, e_ref, e_query,
                      kernel_pos, kernel_weights, gamma, beta, num_act_kernels):
    E = e_ref.shape[0]
    M = query_bxyz.shape[0]
    K, C_in, C_out = kernel_weights.shape
    xe = ref_feat[e_ref].astype(jnp.bfloat16).astype(jnp.float32)
    w = kernel_weights.astype(jnp.bfloat16).astype(jnp.float32)
    rel = ref_bxyz[e_ref, 1:4] - query_bxyz[e_query, 1:4]
    d = jnp.linalg.norm(rel[:, None, :] - kernel_pos[None, :, :], axis=-1)
    neg_top, idx = jax.lax.top_k(-d, num_act_kernels)
    wts = 1.0 / (-neg_top + 1e-8)
    wts = wts / jnp.sum(wts, axis=-1, keepdims=True)
    alpha = jnp.zeros((E, K), jnp.float32).at[jnp.arange(E)[:, None], idx].set(wts)
    # mirror kernel numerics: alpha*xe in f32, one bf16 cast, f32-accum matmul,
    # bf16 message writeback, f32 segment mean.
    prod = (alpha[:, :, None] * xe[:, None, :]).astype(jnp.bfloat16).astype(
        jnp.float32)
    msg = jnp.einsum("ekc,kcd->ed", prod, w)
    msg = msg.astype(jnp.bfloat16).astype(jnp.float32)
    onehot = (e_query[None, :] == jnp.arange(M)[:, None]).astype(jnp.float32)
    cnt = jnp.maximum(jnp.sum(onehot, axis=1, keepdims=True), 1.0)
    qf = (onehot / cnt) @ msg
    mean = jnp.mean(qf, axis=0, keepdims=True)
    var = jnp.mean((qf - mean) ** 2, axis=0, keepdims=True)
    return (qf - mean) * jax.lax.rsqrt(var + 1e-5) * gamma[None] + beta[None]


if __name__ == "__main__":
    # small synthetic shapes
    N, M, E = 64, 32, 128          # ref points, query points, edges
    C_in, C_out = 32, 64
    K, A = 16, 3                   # NUM_KERNEL_POINTS, NUM_ACT_KERNELS
    radius = 1.0                   # RADIUS, KERNEL_LOC='BALL'

    # buffers / parameters (deterministic init)
    kernel_pos = jnp.asarray(compute_ball_positions(K) * radius, jnp.float32)
    key = jax.random.PRNGKey(0)
    k_w, k_rx, k_qx, k_rf, k_er, k_g, k_b = jax.random.split(key, 7)
    # xavier_normal_ on [K, C_in, C_out]: fan_in=C_in*C_out, fan_out=K*C_out
    std = float(np.sqrt(2.0 / (C_in * C_out + K * C_out)))
    kernel_weights = jax.random.normal(k_w, (K, C_in, C_out), jnp.float32) * std
    gamma = 1.0 + 0.1 * jax.random.normal(k_g, (C_out,), jnp.float32)  # BN weight
    beta = 0.05 * jax.random.normal(k_b, (C_out,), jnp.float32)        # BN bias

    # inputs
    ref_xyz = jax.random.uniform(k_rx, (N, 3), jnp.float32, 0.0, 2.0)
    query_xyz = jax.random.uniform(k_qx, (M, 3), jnp.float32, 0.0, 2.0)
    ref_bxyz = jnp.concatenate([jnp.zeros((N, 1), jnp.float32), ref_xyz], axis=1)
    query_bxyz = jnp.concatenate([jnp.zeros((M, 1), jnp.float32), query_xyz], axis=1)
    ref_feat = jax.random.normal(k_rf, (N, C_in), jnp.float32)
    e_ref = jax.random.randint(k_er, (E,), 0, N, jnp.int32)
    e_query = (jnp.arange(E, dtype=jnp.int32) % M)   # every query gets E/M edges

    out = message_passing_block_forward(ref_bxyz, ref_feat, query_bxyz,
                                        e_ref, e_query, kernel_pos,
                                        kernel_weights, gamma, beta, A)
    out = jax.block_until_ready(out)

    ref = reference_forward(ref_bxyz, ref_feat, query_bxyz, e_ref, e_query,
                            kernel_pos, kernel_weights, gamma, beta, A)
    np.testing.assert_allclose(np.asarray(out), np.asarray(ref),
                               rtol=5e-3, atol=5e-3)
    print("KERNEL_OK")
</pallas_src>

<mosaic_0001>
module attributes {stable_mosaic.version = 11 : i64} {
  func.func @message_kernel(%arg0: i32, %arg1: memref<128x32xbf16, #tpu.memory_space<vmem>>, %arg2: memref<128x16xf32, #tpu.memory_space<vmem>>, %arg3: memref<512x128xbf16, #tpu.memory_space<vmem>>, %arg4: memref<128x128xbf16, #tpu.memory_space<vmem>>, %arg5: memref<128x512xf32, #tpu.memory_space<vmem>>) attributes {dimension_semantics = [#tpu.dimension_semantics<parallel>], iteration_bounds = array<i64: 1>, scalar_prefetch = 0 : i64, scratch_operands = 1 : i64, tpu.core_type = #tpu.core_type<tc>, window_params = [{transform_indices = @transform_0, window_bounds = array<i64: 128, 32>}, {transform_indices = @transform_1, window_bounds = array<i64: 128, 16>}, {pipeline_mode = #tpu.pipeline_mode<synchronous>, transform_indices = @transform_2, window_bounds = array<i64: 512, 128>}, {transform_indices = @transform_3, window_bounds = array<i64: 128, 128>}]} {
    %c0 = arith.constant 0 : index
    %c0_0 = arith.constant 0 : index
    %0 = vector.load %arg1[%c0, %c0_0] : memref<128x32xbf16, #tpu.memory_space<vmem>>, vector<128x32xbf16>
    %1 = arith.extf %0 : vector<128x32xbf16> to vector<128x32xf32>
    %c0_1 = arith.constant 0 : index
    %c0_2 = arith.constant 0 : index
    %2 = vector.load %arg2[%c0_1, %c0_2] : memref<128x16xf32, #tpu.memory_space<vmem>>, vector<128x16xf32>
    %3 = vector.extract_strided_slice %2 {offsets = [0, 0], sizes = [128, 1], strides = [1, 1]} : vector<128x16xf32> to vector<128x1xf32>
    %4 = vector.broadcast %3 : vector<128x1xf32> to vector<128x32xf32>
    %5 = arith.mulf %4, %1 : vector<128x32xf32>
    %c0_3 = arith.constant 0 : index
    %c0_4 = arith.constant 0 : index
    %6 = vector.load %arg5[%c0_3, %c0_4] : memref<128x512xf32, #tpu.memory_space<vmem>>, vector<128x32xf32>
    tpu.vector_store %arg5[%c0_3, %c0_4], %5 {strides = array<i32>} : memref<128x512xf32, #tpu.memory_space<vmem>>, vector<128x32xf32>,
    %7 = vector.extract_strided_slice %2 {offsets = [0, 1], sizes = [128, 1], strides = [1, 1]} : vector<128x16xf32> to vector<128x1xf32>
    %8 = vector.broadcast %7 : vector<128x1xf32> to vector<128x32xf32>
    %9 = arith.mulf %8, %1 : vector<128x32xf32>
    %c0_5 = arith.constant 0 : index
    %c32 = arith.constant 32 : index
    %10 = vector.load %arg5[%c0_5, %c32] : memref<128x512xf32, #tpu.memory_space<vmem>>, vector<128x32xf32>
    tpu.vector_store %arg5[%c0_5, %c32], %9 {strides = array<i32>} : memref<128x512xf32, #tpu.memory_space<vmem>>, vector<128x32xf32>,
    %11 = vector.extract_strided_slice %2 {offsets = [0, 2], sizes = [128, 1], strides = [1, 1]} : vector<128x16xf32> to vector<128x1xf32>
    %12 = vector.broadcast %11 : vector<128x1xf32> to vector<128x32xf32>
    %13 = arith.mulf %12, %1 : vector<128x32xf32>
    %c0_6 = arith.constant 0 : index
    %c64 = arith.constant 64 : index
    %14 = vector.load %arg5[%c0_6, %c64] : memref<128x512xf32, #tpu.memory_space<vmem>>, vector<128x32xf32>
    tpu.vector_store %arg5[%c0_6, %c64], %13 {strides = array<i32>} : memref<128x512xf32, #tpu.memory_space<vmem>>, vector<128x32xf32>,
    %15 = vector.extract_strided_slice %2 {offsets = [0, 3], sizes = [128, 1], strides = [1, 1]} : vector<128x16xf32> to vector<128x1xf32>
    %16 = vector.broadcast %15 : vector<128x1xf32> to vector<128x32xf32>
    %17 = arith.mulf %16, %1 : vector<128x32xf32>
    %c0_7 = arith.constant 0 : index
    %c96 = arith.constant 96 : index
    %18 = vector.load %arg5[%c0_7, %c96] : memref<128x512xf32, #tpu.memory_space<vmem>>, vector<128x32xf32>
    tpu.vector_store %arg5[%c0_7, %c96], %17 {strides = array<i32>} : memref<128x512xf32, #tpu.memory_space<vmem>>, vector<128x32xf32>,
    %19 = vector.extract_strided_slice %2 {offsets = [0, 4], sizes = [128, 1], strides = [1, 1]} : vector<128x16xf32> to vector<128x1xf32>
    %20 = vector.broadcast %19 : vector<128x1xf32> to vector<128x32xf32>
    %21 = arith.mulf %20, %1 : vector<128x32xf32>
    %c0_8 = arith.constant 0 : index
    %c128 = arith.constant 128 : index
    %22 = vector.load %arg5[%c0_8, %c128] : memref<128x512xf32, #tpu.memory_space<vmem>>, vector<128x32xf32>
    tpu.vector_store %arg5[%c0_8, %c128], %21 {strides = array<i32>} : memref<128x512xf32, #tpu.memory_space<vmem>>, vector<128x32xf32>,
    %23 = vector.extract_strided_slice %2 {offsets = [0, 5], sizes = [128, 1], strides = [1, 1]} : vector<128x16xf32> to vector<128x1xf32>
    %24 = vector.broadcast %23 : vector<128x1xf32> to vector<128x32xf32>
    %25 = arith.mulf %24, %1 : vector<128x32xf32>
    %c0_9 = arith.constant 0 : index
    %c160 = arith.constant 160 : index
    %26 = vector.load %arg5[%c0_9, %c160] : memref<128x512xf32, #tpu.memory_space<vmem>>, vector<128x32xf32>
    tpu.vector_store %arg5[%c0_9, %c160], %25 {strides = array<i32>} : memref<128x512xf32, #tpu.memory_space<vmem>>, vector<128x32xf32>,
    %27 = vector.extract_strided_slice %2 {offsets = [0, 6], sizes = [128, 1], strides = [1, 1]} : vector<128x16xf32> to vector<128x1xf32>
    %28 = vector.broadcast %27 : vector<128x1xf32> to vector<128x32xf32>
    %29 = arith.mulf %28, %1 : vector<128x32xf32>
    %c0_10 = arith.constant 0 : index
    %c192 = arith.constant 192 : index
    %30 = vector.load %arg5[%c0_10, %c192] : memref<128x512xf32, #tpu.memory_space<vmem>>, vector<128x32xf32>
    tpu.vector_store %arg5[%c0_10, %c192], %29 {strides = array<i32>} : memref<128x512xf32, #tpu.memory_space<vmem>>, vector<128x32xf32>,
    %31 = vector.extract_strided_slice %2 {offsets = [0, 7], sizes = [128, 1], strides = [1, 1]} : vector<128x16xf32> to vector<128x1xf32>
    %32 = vector.broadcast %31 : vector<128x1xf32> to vector<128x32xf32>
    %33 = arith.mulf %32, %1 : vector<128x32xf32>
    %c0_11 = arith.constant 0 : index
    %c224 = arith.constant 224 : index
    %34 = vector.load %arg5[%c0_11, %c224] : memref<128x512xf32, #tpu.memory_space<vmem>>, vector<128x32xf32>
    tpu.vector_store %arg5[%c0_11, %c224], %33 {strides = array<i32>} : memref<128x512xf32, #tpu.memory_space<vmem>>, vector<128x32xf32>,
    %35 = vector.extract_strided_slice %2 {offsets = [0, 8], sizes = [128, 1], strides = [1, 1]} : vector<128x16xf32> to vector<128x1xf32>
    %36 = vector.broadcast %35 : vector<128x1xf32> to vector<128x32xf32>
    %37 = arith.mulf %36, %1 : vector<128x32xf32>
    %c0_12 = arith.constant 0 : index
    %c256 = arith.constant 256 : index
    %38 = vector.load %arg5[%c0_12, %c256] : memref<128x512xf32, #tpu.memory_space<vmem>>, vector<128x32xf32>
    tpu.vector_store %arg5[%c0_12, %c256], %37 {strides = array<i32>} : memref<128x512xf32, #tpu.memory_space<vmem>>, vector<128x32xf32>,
    %39 = vector.extract_strided_slice %2 {offsets = [0, 9], sizes = [128, 1], strides = [1, 1]} : vector<128x16xf32> to vector<128x1xf32>
    %40 = vector.broadcast %39 : vector<128x1xf32> to vector<128x32xf32>
    %41 = arith.mulf %40, %1 : vector<128x32xf32>
    %c0_13 = arith.constant 0 : index
    %c288 = arith.constant 288 : index
    %42 = vector.load %arg5[%c0_13, %c288] : memref<128x512xf32, #tpu.memory_space<vmem>>, vector<128x32xf32>
    tpu.vector_store %arg5[%c0_13, %c288], %41 {strides = array<i32>} : memref<128x512xf32, #tpu.memory_space<vmem>>, vector<128x32xf32>,
    %43 = vector.extract_strided_slice %2 {offsets = [0, 10], sizes = [128, 1], strides = [1, 1]} : vector<128x16xf32> to vector<128x1xf32>
    %44 = vector.broadcast %43 : vector<128x1xf32> to vector<128x32xf32>
    %45 = arith.mulf %44, %1 : vector<128x32xf32>
    %c0_14 = arith.constant 0 : index
    %c320 = arith.constant 320 : index
    %46 = vector.load %arg5[%c0_14, %c320] : memref<128x512xf32, #tpu.memory_space<vmem>>, vector<128x32xf32>
    tpu.vector_store %arg5[%c0_14, %c320], %45 {strides = array<i32>} : memref<128x512xf32, #tpu.memory_space<vmem>>, vector<128x32xf32>,
    %47 = vector.extract_strided_slice %2 {offsets = [0, 11], sizes = [128, 1], strides = [1, 1]} : vector<128x16xf32> to vector<128x1xf32>
    %48 = vector.broadcast %47 : vector<128x1xf32> to vector<128x32xf32>
    %49 = arith.mulf %48, %1 : vector<128x32xf32>
    %c0_15 = arith.constant 0 : index
    %c352 = arith.constant 352 : index
    %50 = vector.load %arg5[%c0_15, %c352] : memref<128x512xf32, #tpu.memory_space<vmem>>, vector<128x32xf32>
    tpu.vector_store %arg5[%c0_15, %c352], %49 {strides = array<i32>} : memref<128x512xf32, #tpu.memory_space<vmem>>, vector<128x32xf32>,
    %51 = vector.extract_strided_slice %2 {offsets = [0, 12], sizes = [128, 1], strides = [1, 1]} : vector<128x16xf32> to vector<128x1xf32>
    %52 = vector.broadcast %51 : vector<128x1xf32> to vector<128x32xf32>
    %53 = arith.mulf %52, %1 : vector<128x32xf32>
    %c0_16 = arith.constant 0 : index
    %c384 = arith.constant 384 : index
    %54 = vector.load %arg5[%c0_16, %c384] : memref<128x512xf32, #tpu.memory_space<vmem>>, vector<128x32xf32>
    tpu.vector_store %arg5[%c0_16, %c384], %53 {strides = array<i32>} : memref<128x512xf32, #tpu.memory_space<vmem>>, vector<128x32xf32>,
    %55 = vector.extract_strided_slice %2 {offsets = [0, 13], sizes = [128, 1], strides = [1, 1]} : vector<128x16xf32> to vector<128x1xf32>
    %56 = vector.broadcast %55 : vector<128x1xf32> to vector<128x32xf32>
    %57 = arith.mulf %56, %1 : vector<128x32xf32>
    %c0_17 = arith.constant 0 : index
    %c416 = arith.constant 416 : index
    %58 = vector.load %arg5[%c0_17, %c416] : memref<128x512xf32, #tpu.memory_space<vmem>>, vector<128x32xf32>
    tpu.vector_store %arg5[%c0_17, %c416], %57 {strides = array<i32>} : memref<128x512xf32, #tpu.memory_space<vmem>>, vector<128x32xf32>,
    %59 = vector.extract_strided_slice %2 {offsets = [0, 14], sizes = [128, 1], strides = [1, 1]} : vector<128x16xf32> to vector<128x1xf32>
    %60 = vector.broadcast %59 : vector<128x1xf32> to vector<128x32xf32>
    %61 = arith.mulf %60, %1 : vector<128x32xf32>
    %c0_18 = arith.constant 0 : index
    %c448 = arith.constant 448 : index
    %62 = vector.load %arg5[%c0_18, %c448] : memref<128x512xf32, #tpu.memory_space<vmem>>, vector<128x32xf32>
    tpu.vector_store %arg5[%c0_18, %c448], %61 {strides = array<i32>} : memref<128x512xf32, #tpu.memory_space<vmem>>, vector<128x32xf32>,
    %63 = vector.extract_strided_slice %2 {offsets = [0, 15], sizes = [128, 1], strides = [1, 1]} : vector<128x16xf32> to vector<128x1xf32>
    %64 = vector.broadcast %63 : vector<128x1xf32> to vector<128x32xf32>
    %65 = arith.mulf %64, %1 : vector<128x32xf32>
    %c0_19 = arith.constant 0 : index
    %c480 = arith.constant 480 : index
    %66 = vector.load %arg5[%c0_19, %c480] : memref<128x512xf32, #tpu.memory_space<vmem>>, vector<128x32xf32>
    tpu.vector_store %arg5[%c0_19, %c480], %65 {strides = array<i32>} : memref<128x512xf32, #tpu.memory_space<vmem>>, vector<128x32xf32>,
    %c0_20 = arith.constant 0 : index
    %c0_21 = arith.constant 0 : index
    %67 = vector.load %arg5[%c0_20, %c0_21] : memref<128x512xf32, #tpu.memory_space<vmem>>, vector<128x512xf32>
    %68 = arith.truncf %67 : vector<128x512xf32> to vector<128x512xbf16>
    %c0_22 = arith.constant 0 : index
    %c0_23 = arith.constant 0 : index
    %69 = vector.load %arg3[%c0_22, %c0_23] : memref<512x128xbf16, #tpu.memory_space<vmem>>, vector<512x128xbf16>
    %cst = arith.constant dense<0.000000e+00> : vector<128x128xf32>
    %70 = tpu.matmul %68, %69, %cst {dimension_numbers = #tpu.dot_dimension_numbers<[1], [0], [0], [1], [0, 0, 1, 1], [], []>} : vector<128x512xbf16>, vector<512x128xbf16>, vector<128x128xf32> -> vector<128x128xf32>
    %71 = arith.truncf %70 : vector<128x128xf32> to vector<128x128xbf16>
    %c0_24 = arith.constant 0 : index
    %c0_25 = arith.constant 0 : index
    %72 = vector.load %arg4[%c0_24, %c0_25] : memref<128x128xbf16, #tpu.memory_space<vmem>>, vector<128x128xbf16>
    tpu.vector_store %arg4[%c0_24, %c0_25], %71 {strides = array<i32>} : memref<128x128xbf16, #tpu.memory_space<vmem>>, vector<128x128xbf16>,
    return
  }
  func.func @transform_0(%arg0: i32) -> (i32, i32) {
    %c0_i32 = arith.constant 0 : i32
    %c0_i32_0 = arith.constant 0 : i32
    return %arg0, %c0_i32 : i32, i32
  }
  func.func @transform_1(%arg0: i32) -> (i32, i32) {
    %c0_i32 = arith.constant 0 : i32
    %c0_i32_0 = arith.constant 0 : i32
    return %arg0, %c0_i32 : i32, i32
  }
  func.func @transform_2(%arg0: i32) -> (i32, i32) {
    %c0_i32 = arith.constant 0 : i32
    %c0_i32_0 = arith.constant 0 : i32
    %c0_i32_1 = arith.constant 0 : i32
    return %c0_i32, %c0_i32_0 : i32, i32
  }
  func.func @transform_3(%arg0: i32) -> (i32, i32) {
    %c0_i32 = arith.constant 0 : i32
    %c0_i32_0 = arith.constant 0 : i32
    return %arg0, %c0_i32 : i32, i32
  }
}

</mosaic_0001>

<llo_original>
// kernel: tpu_custom_call.1
$region0: #{tpu_custom_call.1}
  #allocation0 [shape = 'u32[]', space=smem, size = 0x4, offset = 0x4, fixed_abs, tag = 'smem constant byte address 0x4 - core index']
  #allocation1 [shape = 'u32[144,128]{1,0:T(1,128)}', space=vmem, size = 0x12000, scoped, tag = 'internal scratch']
  #allocation2 [shape = 'f32[128,512]{1,0:T(8,128)}', space=vmem, size = 0x40000, scoped, tag = 'scratch operand']
  %s0 = inlined_call_operand.vmem [shape: bf16[128,32], index: 0, kind: input, shape index: {}]
  %s1 = inlined_call_operand.vmem [shape: f32[128,16], index: 1, kind: input, shape index: {}]
  %s2 = inlined_call_operand.hbm [shape: bf16[512,128], index: 2, kind: input, shape index: {}]
  %s3 = inlined_call_operand.hbm [shape: bf16[128,128], index: 3, kind: output, shape index: {}]
  %s4 = sld [smem:[#allocation0]]
  $region26: #{tpu_custom_call.1} parent=0
    _
  %s6 = ssub.s32 1, %s4
  %s7 = scalar_select 0, %s6, %s4
  $region1: #{tpu_custom_call.1} parent=0
    #allocation3 [shape = 'u8[131072]{0}', space=vmem, size = 0x20000, scoped, tag = 'input window, operand 2, single buffered']
    #allocation4 [shape = 's32[1]{0}', space=sflag, size = 0x4, scoped, tag = 'scoped memory for tpu_custom_call.1']
    #allocation5 [shape = 's32[1]{0}', space=sflag, size = 0x4, scoped, tag = 'scoped memory for tpu_custom_call.1']
    #allocation6 [shape = 'u8[32768]{0}', space=vmem, size = 0x8000, scoped, tag = 'output window, operand 0, single buffered']
    %8 = vsyncpa [#allocation4], 0
    %9 = vsyncpa [#allocation5], 0
    // Predicated region
    $region2: #{tpu_custom_call.1} parent=1 // pred_check
      _
    $region3: #{tpu_custom_call.1} parent=1 // pred_check_branch
      %11 = sbr.rel (0) target = $region5
    $region4: #{tpu_custom_call.1} parent=1 // pred_region
      _
    $region5: #{tpu_custom_call.1} parent=1 // pred_fallthru
      _
    // Predicated region
    $region6: #{tpu_custom_call.1} parent=1 // pred_check
      _
    $region7: #{tpu_custom_call.1} parent=1 // pred_check_branch
      %13 = sbr.rel (0) target = $region9
    $region8: #{tpu_custom_call.1} parent=1 // pred_region
      _
    $region9: #{tpu_custom_call.1} parent=1 // pred_fallthru
      _
    // Predicated region
    $region10: #{tpu_custom_call.1} parent=1 // pred_check
      _
    $region11: #{tpu_custom_call.1} parent=1 // pred_check_branch
      %15 = sbr.rel (0) target = $region13
    $region12: #{tpu_custom_call.1} parent=1 // pred_region
      %s17 = ssub.s32 4096, 4096
      %18 = vsyncadd [#allocation4], %s17
      %s19 = sshll.u32 [#allocation3], 4
      %s20 = int_to_ptr.vmem [resolvable:$true] %s19
      %25 = dma.hbm_to_vmem [thread:$0]  %s2, 4096, %s20, [#allocation4], 64, 64, 4
    $region13: #{tpu_custom_call.1} parent=1 // pred_fallthru
      _
    // Predicated region
    $region14: #{tpu_custom_call.1} parent=1 // pred_check
      _
    $region15: #{tpu_custom_call.1} parent=1 // pred_check_branch
      %27 = sbr.rel (0) target = $region17
    $region16: #{tpu_custom_call.1} parent=1 // pred_region
      %28 = dma.done [#allocation4], 4096
    $region17: #{tpu_custom_call.1} parent=1 // pred_fallthru
      _
    %v30 = vld [vmem:[%s0] sm:$0xf]
    %v31 = vld [vmem:[%s0 + $0x4] sm:$0xf]
    %v32 = vld [vmem:[%s0 + $0x8] sm:$0xf]
    %v33 = vld [vmem:[%s0 + $0xc] sm:$0xf]
    %v34 = vld [vmem:[%s0 + $0x10] sm:$0xf]
    %v35 = vld [vmem:[%s0 + $0x14] sm:$0xf]
    %v36 = vld [vmem:[%s0 + $0x18] sm:$0xf]
    %v37 = vld [vmem:[%s0 + $0x1c] sm:$0xf]
    %v38 = vld [vmem:[%s0 + $0x20] sm:$0xf]
    %v39 = vld [vmem:[%s0 + $0x24] sm:$0xf]
    %v40 = vld [vmem:[%s0 + $0x28] sm:$0xf]
    %v41 = vld [vmem:[%s0 + $0x2c] sm:$0xf]
    %v42 = vld [vmem:[%s0 + $0x30] sm:$0xf]
    %v43 = vld [vmem:[%s0 + $0x34] sm:$0xf]
    %v44 = vld [vmem:[%s0 + $0x38] sm:$0xf]
    %v45 = vld [vmem:[%s0 + $0x3c] sm:$0xf]
    %v46 = vunpack.c.l.bf16 %v30
    %v47 = vunpack.c.l.bf16 %v31
    %v48 = vunpack.c.l.bf16 %v32
    %v49 = vunpack.c.l.bf16 %v33
    %v50 = vunpack.c.l.bf16 %v34
    %v51 = vunpack.c.l.bf16 %v35
    %v52 = vunpack.c.l.bf16 %v36
    %v53 = vunpack.c.l.bf16 %v37
    %v54 = vunpack.c.l.bf16 %v38
    %v55 = vunpack.c.l.bf16 %v39
    %v56 = vunpack.c.l.bf16 %v40
    %v57 = vunpack.c.l.bf16 %v41
    %v58 = vunpack.c.l.bf16 %v42
    %v59 = vunpack.c.l.bf16 %v43
    %v60 = vunpack.c.l.bf16 %v44
    %v61 = vunpack.c.l.bf16 %v45
    %v62 = vld [vmem:[%s1] sm:$0xff]
    %v63 = vld [vmem:[%s1 + $0x8] sm:$0xff]
    %v64 = vld [vmem:[%s1 + $0x10] sm:$0xff]
    %v65 = vld [vmem:[%s1 + $0x18] sm:$0xff]
    %v66 = vld [vmem:[%s1 + $0x20] sm:$0xff]
    %v67 = vld [vmem:[%s1 + $0x28] sm:$0xff]
    %v68 = vld [vmem:[%s1 + $0x30] sm:$0xff]
    %v69 = vld [vmem:[%s1 + $0x38] sm:$0xff]
    %v70 = vld [vmem:[%s1 + $0x40] sm:$0xff]
    %v71 = vld [vmem:[%s1 + $0x48] sm:$0xff]
    %v72 = vld [vmem:[%s1 + $0x50] sm:$0xff]
    %v73 = vld [vmem:[%s1 + $0x58] sm:$0xff]
    %v74 = vld [vmem:[%s1 + $0x60] sm:$0xff]
    %v75 = vld [vmem:[%s1 + $0x68] sm:$0xff]
    %v76 = vld [vmem:[%s1 + $0x70] sm:$0xff]
    %v77 = vld [vmem:[%s1 + $0x78] sm:$0xff]
    %79 = vset.pattern.permute.xlu0 0
    %80 = vperm.xlu0 %79, %v62
    %v81 = vpop.permute.xlu0 %80
    %84 = vset.pattern.permute.xlu0 0
    %85 = vperm.xlu0 %84, %v63
    %v86 = vpop.permute.xlu0 %85
    %89 = vset.pattern.permute.xlu0 0
    %90 = vperm.xlu0 %89, %v64
    %v91 = vpop.permute.xlu0 %90
    %94 = vset.pattern.permute.xlu0 0
    %95 = vperm.xlu0 %94, %v65
    %v96 = vpop.permute.xlu0 %95
    %99 = vset.pattern.permute.xlu0 0
    %100 = vperm.xlu0 %99, %v66
    %v101 = vpop.permute.xlu0 %100
    %104 = vset.pattern.permute.xlu0 0
    %105 = vperm.xlu0 %104, %v67
    %v106 = vpop.permute.xlu0 %105
    %109 = vset.pattern.permute.xlu0 0
    %110 = vperm.xlu0 %109, %v68
    %v111 = vpop.permute.xlu0 %110
    %114 = vset.pattern.permute.xlu0 0
    %115 = vperm.xlu0 %114, %v69
    %v116 = vpop.permute.xlu0 %115
    %119 = vset.pattern.permute.xlu0 0
    %120 = vperm.xlu0 %119, %v70
    %v121 = vpop.permute.xlu0 %120
    %124 = vset.pattern.permute.xlu0 0
    %125 = vperm.xlu0 %124, %v71
    %v126 = vpop.permute.xlu0 %125
    %129 = vset.pattern.permute.xlu0 0
    %130 = vperm.xlu0 %129, %v72
    %v131 = vpop.permute.xlu0 %130
    %134 = vset.pattern.permute.xlu0 0
    %135 = vperm.xlu0 %134, %v73
    %v136 = vpop.permute.xlu0 %135
    %139 = vset.pattern.permute.xlu0 0
    %140 = vperm.xlu0 %139, %v74
    %v141 = vpop.permute.xlu0 %140
    %144 = vset.pattern.permute.xlu0 0
    %145 = vperm.xlu0 %144, %v75
    %v146 = vpop.permute.xlu0 %145
    %149 = vset.pattern.permute.xlu0 0
    %150 = vperm.xlu0 %149, %v76
    %v151 = vpop.permute.xlu0 %150
    %154 = vset.pattern.permute.xlu0 0
    %155 = vperm.xlu0 %154, %v77
    %v156 = vpop.permute.xlu0 %155
    %v158 = vmul.f32 %v81, %v46
    %v159 = vmul.f32 %v86, %v47
    %v160 = vmul.f32 %v91, %v48
    %v161 = vmul.f32 %v96, %v49
    %v162 = vmul.f32 %v101, %v50
    %v163 = vmul.f32 %v106, %v51
    %v164 = vmul.f32 %v111, %v52
    %v165 = vmul.f32 %v116, %v53
    %v166 = vmul.f32 %v121, %v54
    %v167 = vmul.f32 %v126, %v55
    %v168 = vmul.f32 %v131, %v56
    %v169 = vmul.f32 %v136, %v57
    %v170 = vmul.f32 %v141, %v58
    %v171 = vmul.f32 %v146, %v59
    %v172 = vmul.f32 %v151, %v60
    %v173 = vmul.f32 %v156, %v61
    %vm174 = vcmask 261120
    %175 = vst.msk [vmem:[#allocation2] sm:$0xff] %vm174, %v158
    %176 = vst.msk [vmem:[#allocation2 + $0x20] sm:$0xff] %vm174, %v159
    %177 = vst.msk [vmem:[#allocation2 + $0x40] sm:$0xff] %vm174, %v160
    %178 = vst.msk [vmem:[#allocation2 + $0x60] sm:$0xff] %vm174, %v161
    %179 = vst.msk [vmem:[#allocation2 + $0x80] sm:$0xff] %vm174, %v162
    %180 = vst.msk [vmem:[#allocation2 + $0xa0] sm:$0xff] %vm174, %v163
    %181 = vst.msk [vmem:[#allocation2 + $0xc0] sm:$0xff] %vm174, %v164
    %182 = vst.msk [vmem:[#allocation2 + $0xe0] sm:$0xff] %vm174, %v165
    %183 = vst.msk [vmem:[#allocation2 + $0x100] sm:$0xff] %vm174, %v166
    %184 = vst.msk [vmem:[#allocation2 + $0x120] sm:$0xff] %vm174, %v167
    %185 = vst.msk [vmem:[#allocation2 + $0x140] sm:$0xff] %vm174, %v168
    %186 = vst.msk [vmem:[#allocation2 + $0x160] sm:$0xff] %vm174, %v169
    %187 = vst.msk [vmem:[#allocation2 + $0x180] sm:$0xff] %vm174, %v170
    %188 = vst.msk [vmem:[#allocation2 + $0x1a0] sm:$0xff] %vm174, %v171
    %189 = vst.msk [vmem:[#allocation2 + $0x1c0] sm:$0xff] %vm174, %v172
    %190 = vst.msk [vmem:[#allocation2 + $0x1e0] sm:$0xff] %vm174, %v173
    %191 = vset.pattern.permute.xlu0 1
    %192 = vperm.xlu0 %191, %v62
    %v193 = vpop.permute.xlu0 %192
    %195 = vset.pattern.permute.xlu0 1
    %196 = vperm.xlu0 %195, %v63
    %v197 = vpop.permute.xlu0 %196
    %199 = vset.pattern.permute.xlu0 1
    %200 = vperm.xlu0 %199, %v64
    %v201 = vpop.permute.xlu0 %200
    %203 = vset.pattern.permute.xlu0 1
    %204 = vperm.xlu0 %203, %v65
    %v205 = vpop.permute.xlu0 %204
    %207 = vset.pattern.permute.xlu0 1
    %208 = vperm.xlu0 %207, %v66
    %v209 = vpop.permute.xlu0 %208
    %211 = vset.pattern.permute.xlu0 1
    %212 = vperm.xlu0 %211, %v67
    %v213 = vpop.permute.xlu0 %212
    %215 = vset.pattern.permute.xlu0 1
    %216 = vperm.xlu0 %215, %v68
    %v217 = vpop.permute.xlu0 %216
    %219 = vset.pattern.permute.xlu0 1
    %220 = vperm.xlu0 %219, %v69
    %v221 = vpop.permute.xlu0 %220
    %223 = vset.pattern.permute.xlu0 1
    %224 = vperm.xlu0 %223, %v70
    %v225 = vpop.permute.xlu0 %224
    %227 = vset.pattern.permute.xlu0 1
    %228 = vperm.xlu0 %227, %v71
    %v229 = vpop.permute.xlu0 %228
    %231 = vset.pattern.permute.xlu0 1
    %232 = vperm.xlu0 %231, %v72
    %v233 = vpop.permute.xlu0 %232
    %235 = vset.pattern.permute.xlu0 1
    %236 = vperm.xlu0 %235, %v73
    %v237 = vpop.permute.xlu0 %236
    %239 = vset.pattern.permute.xlu0 1
    %240 = vperm.xlu0 %239, %v74
    %v241 = vpop.permute.xlu0 %240
    %243 = vset.pattern.permute.xlu0 1
    %244 = vperm.xlu0 %243, %v75
    %v245 = vpop.permute.xlu0 %244
    %247 = vset.pattern.permute.xlu0 1
    %248 = vperm.xlu0 %247, %v76
    %v249 = vpop.permute.xlu0 %248
    %251 = vset.pattern.permute.xlu0 1
    %252 = vperm.xlu0 %251, %v77
    %v253 = vpop.permute.xlu0 %252
    %v255 = vmul.f32 %v193, %v46
    %v256 = vmul.f32 %v197, %v47
    %v257 = vmul.f32 %v201, %v48
    %v258 = vmul.f32 %v205, %v49
    %v259 = vmul.f32 %v209, %v50
    %v260 = vmul.f32 %v213, %v51
    %v261 = vmul.f32 %v217, %v52
    %v262 = vmul.f32 %v221, %v53
    %v263 = vmul.f32 %v225, %v54
    %v264 = vmul.f32 %v229, %v55
    %v265 = vmul.f32 %v233, %v56
    %v266 = vmul.f32 %v237, %v57
    %v267 = vmul.f32 %v241, %v58
    %v268 = vmul.f32 %v245, %v59
    %v269 = vmul.f32 %v249, %v60
    %v270 = vmul.f32 %v253, %v61
    %287 = vrot.lane.b32.xlu0 %v255, 32
    %v288 = vpop.permute.xlu0 %287
    %289 = vrot.lane.b32.xlu0 %v256, 32
    %v290 = vpop.permute.xlu0 %289
    %291 = vrot.lane.b32.xlu0 %v257, 32
    %v292 = vpop.permute.xlu0 %291
    %293 = vrot.lane.b32.xlu0 %v258, 32
    %v294 = vpop.permute.xlu0 %293
    %295 = vrot.lane.b32.xlu0 %v259, 32
    %v296 = vpop.permute.xlu0 %295
    %297 = vrot.lane.b32.xlu0 %v260, 32
    %v298 = vpop.permute.xlu0 %297
    %299 = vrot.lane.b32.xlu0 %v261, 32
    %v300 = vpop.permute.xlu0 %299
    %301 = vrot.lane.b32.xlu0 %v262, 32
    %v302 = vpop.permute.xlu0 %301
    %303 = vrot.lane.b32.xlu0 %v263, 32
    %v304 = vpop.permute.xlu0 %303
    %305 = vrot.lane.b32.xlu0 %v264, 32
    %v306 = vpop.permute.xlu0 %305
    %307 = vrot.lane.b32.xlu0 %v265, 32
    %v308 = vpop.permute.xlu0 %307
    %309 = vrot.lane.b32.xlu0 %v266, 32
    %v310 = vpop.permute.xlu0 %309
    %311 = vrot.lane.b32.xlu0 %v267, 32
    %v312 = vpop.permute.xlu0 %311
    %313 = vrot.lane.b32.xlu0 %v268, 32
    %v314 = vpop.permute.xlu0 %313
    %315 = vrot.lane.b32.xlu0 %v269, 32
    %v316 = vpop.permute.xlu0 %315
    %317 = vrot.lane.b32.xlu0 %v270, 32
    %v318 = vpop.permute.xlu0 %317
    %vm335 = vcmask 523520
    %336 = vst.msk [vmem:[#allocation2] sm:$0xff] %vm335, %v288
    %337 = vst.msk [vmem:[#allocation2 + $0x20] sm:$0xff] %vm335, %v290
    %338 = vst.msk [vmem:[#allocation2 + $0x40] sm:$0xff] %vm335, %v292
    %339 = vst.msk [vmem:[#allocation2 + $0x60] sm:$0xff] %vm335, %v294
    %340 = vst.msk [vmem:[#allocation2 + $0x80] sm:$0xff] %vm335, %v296
    %341 = vst.msk [vmem:[#allocation2 + $0xa0] sm:$0xff] %vm335, %v298
    %342 = vst.msk [vmem:[#allocation2 + $0xc0] sm:$0xff] %vm335, %v300
    %343 = vst.msk [vmem:[#allocation2 + $0xe0] sm:$0xff] %vm335, %v302
    %344 = vst.msk [vmem:[#allocation2 + $0x100] sm:$0xff] %vm335, %v304
    %345 = vst.msk [vmem:[#allocation2 + $0x120] sm:$0xff] %vm335, %v306
    %346 = vst.msk [vmem:[#allocation2 + $0x140] sm:$0xff] %vm335, %v308
    %347 = vst.msk [vmem:[#allocation2 + $0x160] sm:$0xff] %vm335, %v310
    %348 = vst.msk [vmem:[#allocation2 + $0x180] sm:$0xff] %vm335, %v312
    %349 = vst.msk [vmem:[#allocation2 + $0x1a0] sm:$0xff] %vm335, %v314
    %350 = vst.msk [vmem:[#allocation2 + $0x1c0] sm:$0xff] %vm335, %v316
    %351 = vst.msk [vmem:[#allocation2 + $0x1e0] sm:$0xff] %vm335, %v318
    %352 = vset.pattern.permute.xlu0 2
    %353 = vperm.xlu0 %352, %v62
    %v354 = vpop.permute.xlu0 %353
    %356 = vset.pattern.permute.xlu0 2
    %357 = vperm.xlu0 %356, %v63
    %v358 = vpop.permute.xlu0 %357
    %360 = vset.pattern.permute.xlu0 2
    %361 = vperm.xlu0 %360, %v64
    %v362 = vpop.permute.xlu0 %361
    %364 = vset.pattern.permute.xlu0 2
    %365 = vperm.xlu0 %364, %v65
    %v366 = vpop.permute.xlu0 %365
    %368 = vset.pattern.permute.xlu0 2
    %369 = vperm.xlu0 %368, %v66
    %v370 = vpop.permute.xlu0 %369
    %372 = vset.pattern.permute.xlu0 2
    %373 = vperm.xlu0 %372, %v67
    %v374 = vpop.permute.xlu0 %373
    %376 = vset.pattern.permute.xlu0 2
    %377 = vperm.xlu0 %376, %v68
    %v378 = vpop.permute.xlu0 %377
    %380 = vset.pattern.permute.xlu0 2
    %381 = vperm.xlu0 %380, %v69
    %v382 = vpop.permute.xlu0 %381
    %384 = vset.pattern.permute.xlu0 2
    %385 = vperm.xlu0 %384, %v70
    %v386 = vpop.permute.xlu0 %385
    %388 = vset.pattern.permute.xlu0 2
    %389 = vperm.xlu0 %388, %v71
    %v390 = vpop.permute.xlu0 %389
    %392 = vset.pattern.permute.xlu0 2
    %393 = vperm.xlu0 %392, %v72
    %v394 = vpop.permute.xlu0 %393
    %396 = vset.pattern.permute.xlu0 2
    %397 = vperm.xlu0 %396, %v73
    %v398 = vpop.permute.xlu0 %397
    %400 = vset.pattern.permute.xlu0 2
    %401 = vperm.xlu0 %400, %v74
    %v402 = vpop.permute.xlu0 %401
    %404 = vset.pattern.permute.xlu0 2
    %405 = vperm.xlu0 %404, %v75
    %v406 = vpop.permute.xlu0 %405
    %408 = vset.pattern.permute.xlu0 2
    %409 = vperm.xlu0 %408, %v76
    %v410 = vpop.permute.xlu0 %409
    %412 = vset.pattern.permute.xlu0 2
    %413 = vperm.xlu0 %412, %v77
    %v414 = vpop.permute.xlu0 %413
    %v416 = vmul.f32 %v354, %v46
    %v417 = vmul.f32 %v358, %v47
    %v418 = vmul.f32 %v362, %v48
    %v419 = vmul.f32 %v366, %v49
    %v420 = vmul.f32 %v370, %v50
    %v421 = vmul.f32 %v374, %v51
    %v422 = vmul.f32 %v378, %v52
    %v423 = vmul.f32 %v382, %v53
    %v424 = vmul.f32 %v386, %v54
    %v425 = vmul.f32 %v390, %v55
    %v426 = vmul.f32 %v394, %v56
    %v427 = vmul.f32 %v398, %v57
    %v428 = vmul.f32 %v402, %v58
    %v429 = vmul.f32 %v406, %v59
    %v430 = vmul.f32 %v410, %v60
    %v431 = vmul.f32 %v414, %v61
    %448 = vrot.lane.b32.xlu0 %v416, 64
    %v449 = vpop.permute.xlu0 %448
    %450 = vrot.lane.b32.xlu0 %v417, 64
    %v451 = vpop.permute.xlu0 %450
    %452 = vrot.lane.b32.xlu0 %v418, 64
    %v453 = vpop.permute.xlu0 %452
    %454 = vrot.lane.b32.xlu0 %v419, 64
    %v455 = vpop.permute.xlu0 %454
    %456 = vrot.lane.b32.xlu0 %v420, 64
    %v457 = vpop.permute.xlu0 %456
    %458 = vrot.lane.b32.xlu0 %v421, 64
    %v459 = vpop.permute.xlu0 %458
    %460 = vrot.lane.b32.xlu0 %v422, 64
    %v461 = vpop.permute.xlu0 %460
    %462 = vrot.lane.b32.xlu0 %v423, 64
    %v463 = vpop.permute.xlu0 %462
    %464 = vrot.lane.b32.xlu0 %v424, 64
    %v465 = vpop.permute.xlu0 %464
    %466 = vrot.lane.b32.xlu0 %v425, 64
    %v467 = vpop.permute.xlu0 %466
    %468 = vrot.lane.b32.xlu0 %v426, 64
    %v469 = vpop.permute.xlu0 %468
    %470 = vrot.lane.b32.xlu0 %v427, 64
    %v471 = vpop.permute.xlu0 %470
    %472 = vrot.lane.b32.xlu0 %v428, 64
    %v473 = vpop.permute.xlu0 %472
    %474 = vrot.lane.b32.xlu0 %v429, 64
    %v475 = vpop.permute.xlu0 %474
    %476 = vrot.lane.b32.xlu0 %v430, 64
    %v477 = vpop.permute.xlu0 %476
    %478 = vrot.lane.b32.xlu0 %v431, 64
    %v479 = vpop.permute.xlu0 %478
    %vm496 = vcmask 785920
    %497 = vst.msk [vmem:[#allocation2] sm:$0xff] %vm496, %v449
    %498 = vst.msk [vmem:[#allocation2 + $0x20] sm:$0xff] %vm496, %v451
    %499 = vst.msk [vmem:[#allocation2 + $0x40] sm:$0xff] %vm496, %v453
    %500 = vst.msk [vmem:[#allocation2 + $0x60] sm:$0xff] %vm496, %v455
    %501 = vst.msk [vmem:[#allocation2 + $0x80] sm:$0xff] %vm496, %v457
    %502 = vst.msk [vmem:[#allocation2 + $0xa0] sm:$0xff] %vm496, %v459
    %503 = vst.msk [vmem:[#allocation2 + $0xc0] sm:$0xff] %vm496, %v461
    %504 = vst.msk [vmem:[#allocation2 + $0xe0] sm:$0xff] %vm496, %v463
    %505 = vst.msk [vmem:[#allocation2 + $0x100] sm:$0xff] %vm496, %v465
    %506 = vst.msk [vmem:[#allocation2 + $0x120] sm:$0xff] %vm496, %v467
    %507 = vst.msk [vmem:[#allocation2 + $0x140] sm:$0xff] %vm496, %v469
    %508 = vst.msk [vmem:[#allocation2 + $0x160] sm:$0xff] %vm496, %v471
    %509 = vst.msk [vmem:[#allocation2 + $0x180] sm:$0xff] %vm496, %v473
    %510 = vst.msk [vmem:[#allocation2 + $0x1a0] sm:$0xff] %vm496, %v475
    %511 = vst.msk [vmem:[#allocation2 + $0x1c0] sm:$0xff] %vm496, %v477
    %512 = vst.msk [vmem:[#allocation2 + $0x1e0] sm:$0xff] %vm496, %v479
    %513 = vset.pattern.permute.xlu0 3
    %514 = vperm.xlu0 %513, %v62
    %v515 = vpop.permute.xlu0 %514
    %517 = vset.pattern.permute.xlu0 3
    %518 = vperm.xlu0 %517, %v63
    %v519 = vpop.permute.xlu0 %518
    %521 = vset.pattern.permute.xlu0 3
    %522 = vperm.xlu0 %521, %v64
    %v523 = vpop.permute.xlu0 %522
    %525 = vset.pattern.permute.xlu0 3
    %526 = vperm.xlu0 %525, %v65
    %v527 = vpop.permute.xlu0 %526
    %529 = vset.pattern.permute.xlu0 3
    %530 = vperm.xlu0 %529, %v66
    %v531 = vpop.permute.xlu0 %530
    %533 = vset.pattern.permute.xlu0 3
    %534 = vperm.xlu0 %533, %v67
    %v535 = vpop.permute.xlu0 %534
    %537 = vset.pattern.permute.xlu0 3
    %538 = vperm.xlu0 %537, %v68
    %v539 = vpop.permute.xlu0 %538
    %541 = vset.pattern.permute.xlu0 3
    %542 = vperm.xlu0 %541, %v69
    %v543 = vpop.permute.xlu0 %542
    %545 = vset.pattern.permute.xlu0 3
    %546 = vperm.xlu0 %545, %v70
    %v547 = vpop.permute.xlu0 %546
    %549 = vset.pattern.permute.xlu0 3
    %550 = vperm.xlu0 %549, %v71
    %v551 = vpop.permute.xlu0 %550
    %553 = vset.pattern.permute.xlu0 3
    %554 = vperm.xlu0 %553, %v72
    %v555 = vpop.permute.xlu0 %554
    %557 = vset.pattern.permute.xlu0 3
    %558 = vperm.xlu0 %557, %v73
    %v559 = vpop.permute.xlu0 %558
    %561 = vset.pattern.permute.xlu0 3
    %562 = vperm.xlu0 %561, %v74
    %v563 = vpop.permute.xlu0 %562
    %565 = vset.pattern.permute.xlu0 3
    %566 = vperm.xlu0 %565, %v75
    %v567 = vpop.permute.xlu0 %566
    %569 = vset.pattern.permute.xlu0 3
    %570 = vperm.xlu0 %569, %v76
    %v571 = vpop.permute.xlu0 %570
    %573 = vset.pattern.permute.xlu0 3
    %574 = vperm.xlu0 %573, %v77
    %v575 = vpop.permute.xlu0 %574
    %v577 = vmul.f32 %v515, %v46
    %v578 = vmul.f32 %v519, %v47
    %v579 = vmul.f32 %v523, %v48
    %v580 = vmul.f32 %v527, %v49
    %v581 = vmul.f32 %v531, %v50
    %v582 = vmul.f32 %v535, %v51
    %v583 = vmul.f32 %v539, %v52
    %v584 = vmul.f32 %v543, %v53
    %v585 = vmul.f32 %v547, %v54
    %v586 = vmul.f32 %v551, %v55
    %v587 = vmul.f32 %v555, %v56
    %v588 = vmul.f32 %v559, %v57
    %v589 = vmul.f32 %v563, %v58
    %v590 = vmul.f32 %v567, %v59
    %v591 = vmul.f32 %v571, %v60
    %v592 = vmul.f32 %v575, %v61
    %609 = vrot.lane.b32.xlu0 %v577, 96
    %v610 = vpop.permute.xlu0 %609
    %611 = vrot.lane.b32.xlu0 %v578, 96
    %v612 = vpop.permute.xlu0 %611
    %613 = vrot.lane.b32.xlu0 %v579, 96
    %v614 = vpop.permute.xlu0 %613
    %615 = vrot.lane.b32.xlu0 %v580, 96
    %v616 = vpop.permute.xlu0 %615
    %617 = vrot.lane.b32.xlu0 %v581, 96
    %v618 = vpop.permute.xlu0 %617
    %619 = vrot.lane.b32.xlu0 %v582, 96
    %v620 = vpop.permute.xlu0 %619
    %621 = vrot.lane.b32.xlu0 %v583, 96
    %v622 = vpop.permute.xlu0 %621
    %623 = vrot.lane.b32.xlu0 %v584, 96
    %v624 = vpop.permute.xlu0 %623
    %625 = vrot.lane.b32.xlu0 %v585, 96
    %v626 = vpop.permute.xlu0 %625
    %627 = vrot.lane.b32.xlu0 %v586, 96
    %v628 = vpop.permute.xlu0 %627
    %629 = vrot.lane.b32.xlu0 %v587, 96
    %v630 = vpop.permute.xlu0 %629
    %631 = vrot.lane.b32.xlu0 %v588, 96
    %v632 = vpop.permute.xlu0 %631
    %633 = vrot.lane.b32.xlu0 %v589, 96
    %v634 = vpop.permute.xlu0 %633
    %635 = vrot.lane.b32.xlu0 %v590, 96
    %v636 = vpop.permute.xlu0 %635
    %637 = vrot.lane.b32.xlu0 %v591, 96
    %v638 = vpop.permute.xlu0 %637
    %639 = vrot.lane.b32.xlu0 %v592, 96
    %v640 = vpop.permute.xlu0 %639
    %vm657 = vcmask 1048320
    %658 = vst.msk [vmem:[#allocation2] sm:$0xff] %vm657, %v610
    %659 = vst.msk [vmem:[#allocation2 + $0x20] sm:$0xff] %vm657, %v612
    %660 = vst.msk [vmem:[#allocation2 + $0x40] sm:$0xff] %vm657, %v614
    %661 = vst.msk [vmem:[#allocation2 + $0x60] sm:$0xff] %vm657, %v616
    %662 = vst.msk [vmem:[#allocation2 + $0x80] sm:$0xff] %vm657, %v618
    %663 = vst.msk [vmem:[#allocation2 + $0xa0] sm:$0xff] %vm657, %v620
    %664 = vst.msk [vmem:[#allocation2 + $0xc0] sm:$0xff] %vm657, %v622
    %665 = vst.msk [vmem:[#allocation2 + $0xe0] sm:$0xff] %vm657, %v624
    %666 = vst.msk [vmem:[#allocation2 + $0x100] sm:$0xff] %vm657, %v626
    %667 = vst.msk [vmem:[#allocation2 + $0x120] sm:$0xff] %vm657, %v628
    %668 = vst.msk [vmem:[#allocation2 + $0x140] sm:$0xff] %vm657, %v630
    %669 = vst.msk [vmem:[#allocation2 + $0x160] sm:$0xff] %vm657, %v632
    %670 = vst.msk [vmem:[#allocation2 + $0x180] sm:$0xff] %vm657, %v634
    %671 = vst.msk [vmem:[#allocation2 + $0x1a0] sm:$0xff] %vm657, %v636
    %672 = vst.msk [vmem:[#allocation2 + $0x1c0] sm:$0xff] %vm657, %v638
    %673 = vst.msk [vmem:[#allocation2 + $0x1e0] sm:$0xff] %vm657, %v640
    %674 = vset.pattern.permute.xlu0 4
    %675 = vperm.xlu0 %674, %v62
    %v676 = vpop.permute.xlu0 %675
    %678 = vset.pattern.permute.xlu0 4
    %679 = vperm.xlu0 %678, %v63
    %v680 = vpop.permute.xlu0 %679
    %682 = vset.pattern.permute.xlu0 4
    %683 = vperm.xlu0 %682, %v64
    %v684 = vpop.permute.xlu0 %683
    %686 = vset.pattern.permute.xlu0 4
    %687 = vperm.xlu0 %686, %v65
    %v688 = vpop.permute.xlu0 %687
    %690 = vset.pattern.permute.xlu0 4
    %691 = vperm.xlu0 %690, %v66
    %v692 = vpop.permute.xlu0 %691
    %694 = vset.pattern.permute.xlu0 4
    %695 = vperm.xlu0 %694, %v67
    %v696 = vpop.permute.xlu0 %695
    %698 = vset.pattern.permute.xlu0 4
    %699 = vperm.xlu0 %698, %v68
    %v700 = vpop.permute.xlu0 %699
    %702 = vset.pattern.permute.xlu0 4
    %703 = vperm.xlu0 %702, %v69
    %v704 = vpop.permute.xlu0 %703
    %706 = vset.pattern.permute.xlu0 4
    %707 = vperm.xlu0 %706, %v70
    %v708 = vpop.permute.xlu0 %707
    %710 = vset.pattern.permute.xlu0 4
    %711 = vperm.xlu0 %710, %v71
    %v712 = vpop.permute.xlu0 %711
    %714 = vset.pattern.permute.xlu0 4
    %715 = vperm.xlu0 %714, %v72
    %v716 = vpop.permute.xlu0 %715
    %718 = vset.pattern.permute.xlu0 4
    %719 = vperm.xlu0 %718, %v73
    %v720 = vpop.permute.xlu0 %719
    %722 = vset.pattern.permute.xlu0 4
    %723 = vperm.xlu0 %722, %v74
    %v724 = vpop.permute.xlu0 %723
    %726 = vset.pattern.permute.xlu0 4
    %727 = vperm.xlu0 %726, %v75
    %v728 = vpop.permute.xlu0 %727
    %730 = vset.pattern.permute.xlu0 4
    %731 = vperm.xlu0 %730, %v76
    %v732 = vpop.permute.xlu0 %731
    %734 = vset.pattern.permute.xlu0 4
    %735 = vperm.xlu0 %734, %v77
    %v736 = vpop.permute.xlu0 %735
    %v738 = vmul.f32 %v676, %v46
    %v739 = vmul.f32 %v680, %v47
    %v740 = vmul.f32 %v684, %v48
    %v741 = vmul.f32 %v688, %v49
    %v742 = vmul.f32 %v692, %v50
    %v743 = vmul.f32 %v696, %v51
    %v744 = vmul.f32 %v700, %v52
    %v745 = vmul.f32 %v704, %v53
    %v746 = vmul.f32 %v708, %v54
    %v747 = vmul.f32 %v712, %v55
    %v748 = vmul.f32 %v716, %v56
    %v749 = vmul.f32 %v720, %v57
    %v750 = vmul.f32 %v724, %v58
    %v751 = vmul.f32 %v728, %v59
    %v752 = vmul.f32 %v732, %v60
    %v753 = vmul.f32 %v736, %v61
    %754 = vst.msk [vmem:[#allocation2 + $0x8] sm:$0xff] %vm174, %v738
    %755 = vst.msk [vmem:[#allocation2 + $0x28] sm:$0xff] %vm174, %v739
    %756 = vst.msk [vmem:[#allocation2 + $0x48] sm:$0xff] %vm174, %v740
    %757 = vst.msk [vmem:[#allocation2 + $0x68] sm:$0xff] %vm174, %v741
    %758 = vst.msk [vmem:[#allocation2 + $0x88] sm:$0xff] %vm174, %v742
    %759 = vst.msk [vmem:[#allocation2 + $0xa8] sm:$0xff] %vm174, %v743
    %760 = vst.msk [vmem:[#allocation2 + $0xc8] sm:$0xff] %vm174, %v744
    %761 = vst.msk [vmem:[#allocation2 + $0xe8] sm:$0xff] %vm174, %v745
    %762 = vst.msk [vmem:[#allocation2 + $0x108] sm:$0xff] %vm174, %v746
    %763 = vst.msk [vmem:[#allocation2 + $0x128] sm:$0xff] %vm174, %v747
    %764 = vst.msk [vmem:[#allocation2 + $0x148] sm:$0xff] %vm174, %v748
    %765 = vst.msk [vmem:[#allocation2 + $0x168] sm:$0xff] %vm174, %v749
    %766 = vst.msk [vmem:[#allocation2 + $0x188] sm:$0xff] %vm174, %v750
    %767 = vst.msk [vmem:[#allocation2 + $0x1a8] sm:$0xff] %vm174, %v751
    %768 = vst.msk [vmem:[#allocation2 + $0x1c8] sm:$0xff] %vm174, %v752
    %769 = vst.msk [vmem:[#allocation2 + $0x1e8] sm:$0xff] %vm174, %v753
    %770 = vset.pattern.permute.xlu0 5
    %771 = vperm.xlu0 %770, %v62
    %v772 = vpop.permute.xlu0 %771
    %774 = vset.pattern.permute.xlu0 5
    %775 = vperm.xlu0 %774, %v63
    %v776 = vpop.permute.xlu0 %775
    %778 = vset.pattern.permute.xlu0 5
    %779 = vperm.xlu0 %778, %v64
    %v780 = vpop.permute.xlu0 %779
    %782 = vset.pattern.permute.xlu0 5
    %783 = vperm.xlu0 %782, %v65
    %v784 = vpop.permute.xlu0 %783
    %786 = vset.pattern.permute.xlu0 5
    %787 = vperm.xlu0 %786, %v66
    %v788 = vpop.permute.xlu0 %787
    %790 = vset.pattern.permute.xlu0 5
    %791 = vperm.xlu0 %790, %v67
    %v792 = vpop.permute.xlu0 %791
    %794 = vset.pattern.permute.xlu0 5
    %795 = vperm.xlu0 %794, %v68
    %v796 = vpop.permute.xlu0 %795
    %798 = vset.pattern.permute.xlu0 5
    %799 = vperm.xlu0 %798, %v69
    %v800 = vpop.permute.xlu0 %799
    %802 = vset.pattern.permute.xlu0 5
    %803 = vperm.xlu0 %802, %v70
    %v804 = vpop.permute.xlu0 %803
    %806 = vset.pattern.permute.xlu0 5
    %807 = vperm.xlu0 %806, %v71
    %v808 = vpop.permute.xlu0 %807
    %810 = vset.pattern.permute.xlu0 5
    %811 = vperm.xlu0 %810, %v72
    %v812 = vpop.permute.xlu0 %811
    %814 = vset.pattern.permute.xlu0 5
    %815 = vperm.xlu0 %814, %v73
    %v816 = vpop.permute.xlu0 %815
    %818 = vset.pattern.permute.xlu0 5
    %819 = vperm.xlu0 %818, %v74
    %v820 = vpop.permute.xlu0 %819
    %822 = vset.pattern.permute.xlu0 5
    %823 = vperm.xlu0 %822, %v75
    %v824 = vpop.permute.xlu0 %823
    %826 = vset.pattern.permute.xlu0 5
    %827 = vperm.xlu0 %826, %v76
    %v828 = vpop.permute.xlu0 %827
    %830 = vset.pattern.permute.xlu0 5
    %831 = vperm.xlu0 %830, %v77
    %v832 = vpop.permute.xlu0 %831
    %v834 = vmul.f32 %v772, %v46
    %v835 = vmul.f32 %v776, %v47
    %v836 = vmul.f32 %v780, %v48
    %v837 = vmul.f32 %v784, %v49
    %v838 = vmul.f32 %v788, %v50
    %v839 = vmul.f32 %v792, %v51
    %v840 = vmul.f32 %v796, %v52
    %v841 = vmul.f32 %v800, %v53
    %v842 = vmul.f32 %v804, %v54
    %v843 = vmul.f32 %v808, %v55
    %v844 = vmul.f32 %v812, %v56
    %v845 = vmul.f32 %v816, %v57
    %v846 = vmul.f32 %v820, %v58
    %v847 = vmul.f32 %v824, %v59
    %v848 = vmul.f32 %v828, %v60
    %v849 = vmul.f32 %v832, %v61
    %866 = vrot.lane.b32.xlu0 %v834, 32
    %v867 = vpop.permute.xlu0 %866
    %868 = vrot.lane.b32.xlu0 %v835, 32
    %v869 = vpop.permute.xlu0 %868
    %870 = vrot.lane.b32.xlu0 %v836, 32
    %v871 = vpop.permute.xlu0 %870
    %872 = vrot.lane.b32.xlu0 %v837, 32
    %v873 = vpop.permute.xlu0 %872
    %874 = vrot.lane.b32.xlu0 %v838, 32
    %v875 = vpop.permute.xlu0 %874
    %876 = vrot.lane.b32.xlu0 %v839, 32
    %v877 = vpop.permute.xlu0 %876
    %878 = vrot.lane.b32.xlu0 %v840, 32
    %v879 = vpop.permute.xlu0 %878
    %880 = vrot.lane.b32.xlu0 %v841, 32
    %v881 = vpop.permute.xlu0 %880
    %882 = vrot.lane.b32.xlu0 %v842, 32
    %v883 = vpop.permute.xlu0 %882
    %884 = vrot.lane.b32.xlu0 %v843, 32
    %v885 = vpop.permute.xlu0 %884
    %886 = vrot.lane.b32.xlu0 %v844, 32
    %v887 = vpop.permute.xlu0 %886
    %888 = vrot.lane.b32.xlu0 %v845, 32
    %v889 = vpop.permute.xlu0 %888
    %890 = vrot.lane.b32.xlu0 %v846, 32
    %v891 = vpop.permute.xlu0 %890
    %892 = vrot.lane.b32.xlu0 %v847, 32
    %v893 = vpop.permute.xlu0 %892
    %894 = vrot.lane.b32.xlu0 %v848, 32
    %v895 = vpop.permute.xlu0 %894
    %896 = vrot.lane.b32.xlu0 %v849, 32
    %v897 = vpop.permute.xlu0 %896
    %914 = vst.msk [vmem:[#allocation2 + $0x8] sm:$0xff] %vm335, %v867
    %915 = vst.msk [vmem:[#allocation2 + $0x28] sm:$0xff] %vm335, %v869
    %916 = vst.msk [vmem:[#allocation2 + $0x48] sm:$0xff] %vm335, %v871
    %917 = vst.msk [vmem:[#allocation2 + $0x68] sm:$0xff] %vm335, %v873
    %918 = vst.msk [vmem:[#allocation2 + $0x88] sm:$0xff] %vm335, %v875
    %919 = vst.msk [vmem:[#allocation2 + $0xa8] sm:$0xff] %vm335, %v877
    %920 = vst.msk [vmem:[#allocation2 + $0xc8] sm:$0xff] %vm335, %v879
    %921 = vst.msk [vmem:[#allocation2 + $0xe8] sm:$0xff] %vm335, %v881
    %922 = vst.msk [vmem:[#allocation2 + $0x108] sm:$0xff] %vm335, %v883
    %923 = vst.msk [vmem:[#allocation2 + $0x128] sm:$0xff] %vm335, %v885
    %924 = vst.msk [vmem:[#allocation2 + $0x148] sm:$0xff] %vm335, %v887
    %925 = vst.msk [vmem:[#allocation2 + $0x168] sm:$0xff] %vm335, %v889
    %926 = vst.msk [vmem:[#allocation2 + $0x188] sm:$0xff] %vm335, %v891
    %927 = vst.msk [vmem:[#allocation2 + $0x1a8] sm:$0xff] %vm335, %v893
    %928 = vst.msk [vmem:[#allocation2 + $0x1c8] sm:$0xff] %vm335, %v895
    %929 = vst.msk [vmem:[#allocation2 + $0x1e8] sm:$0xff] %vm335, %v897
    %930 = vset.pattern.permute.xlu0 6
    %931 = vperm.xlu0 %930, %v62
    %v932 = vpop.permute.xlu0 %931
    %934 = vset.pattern.permute.xlu0 6
    %935 = vperm.xlu0 %934, %v63
    %v936 = vpop.permute.xlu0 %935
    %938 = vset.pattern.permute.xlu0 6
    %939 = vperm.xlu0 %938, %v64
    %v940 = vpop.permute.xlu0 %939
    %942 = vset.pattern.permute.xlu0 6
    %943 = vperm.xlu0 %942, %v65
    %v944 = vpop.permute.xlu0 %943
    %946 = vset.pattern.permute.xlu0 6
    %947 = vperm.xlu0 %946, %v66
    %v948 = vpop.permute.xlu0 %947
    %950 = vset.pattern.permute.xlu0 6
    %951 = vperm.xlu0 %950, %v67
    %v952 = vpop.permute.xlu0 %951
    %954 = vset.pattern.permute.xlu0 6
    %955 = vperm.xlu0 %954, %v68
    %v956 = vpop.permute.xlu0 %955
    %958 = vset.pattern.permute.xlu0 6
    %959 = vperm.xlu0 %958, %v69
    %v960 = vpop.permute.xlu0 %959
    %962 = vset.pattern.permute.xlu0 6
    %963 = vperm.xlu0 %962, %v70
    %v964 = vpop.permute.xlu0 %963
    %966 = vset.pattern.permute.xlu0 6
    %967 = vperm.xlu0 %966, %v71
    %v968 = vpop.permute.xlu0 %967
    %970 = vset.pattern.permute.xlu0 6
    %971 = vperm.xlu0 %970, %v72
    %v972 = vpop.permute.xlu0 %971
    %974 = vset.pattern.permute.xlu0 6
    %975 = vperm.xlu0 %974, %v73
    %v976 = vpop.permute.xlu0 %975
    %978 = vset.pattern.permute.xlu0 6
    %979 = vperm.xlu0 %978, %v74
    %v980 = vpop.permute.xlu0 %979
    %982 = vset.pattern.permute.xlu0 6
    %983 = vperm.xlu0 %982, %v75
    %v984 = vpop.permute.xlu0 %983
    %986 = vset.pattern.permute.xlu0 6
    %987 = vperm.xlu0 %986, %v76
    %v988 = vpop.permute.xlu0 %987
    %990 = vset.pattern.permute.xlu0 6
    %991 = vperm.xlu0 %990, %v77
    %v992 = vpop.permute.xlu0 %991
    %v994 = vmul.f32 %v932, %v46
    %v995 = vmul.f32 %v936, %v47
    %v996 = vmul.f32 %v940, %v48
    %v997 = vmul.f32 %v944, %v49
    %v998 = vmul.f32 %v948, %v50
    %v999 = vmul.f32 %v952, %v51
    %v1000 = vmul.f32 %v956, %v52
    %v1001 = vmul.f32 %v960, %v53
    %v1002 = vmul.f32 %v964, %v54
    %v1003 = vmul.f32 %v968, %v55
    %v1004 = vmul.f32 %v972, %v56
    %v1005 = vmul.f32 %v976, %v57
    %v1006 = vmul.f32 %v980, %v58
    %v1007 = vmul.f32 %v984, %v59
    %v1008 = vmul.f32 %v988, %v60
    %v1009 = vmul.f32 %v992, %v61
    %1026 = vrot.lane.b32.xlu0 %v994, 64
    %v1027 = vpop.permute.xlu0 %1026
    %1028 = vrot.lane.b32.xlu0 %v995, 64
    %v1029 = vpop.permute.xlu0 %1028
    %1030 = vrot.lane.b32.xlu0 %v996, 64
    %v1031 = vpop.permute.xlu0 %1030
    %1032 = vrot.lane.b32.xlu0 %v997, 64
    %v1033 = vpop.permute.xlu0 %1032
    %1034 = vrot.lane.b32.xlu0 %v998, 64
    %v1035 = vpop.permute.xlu0 %1034
    %1036 = vrot.lane.b32.xlu0 %v999, 64
    %v1037 = vpop.permute.xlu0 %1036
    %1038 = vrot.lane.b32.xlu0 %v1000, 64
    %v1039 = vpop.permute.xlu0 %1038
    %1040 = vrot.lane.b32.xlu0 %v1001, 64
    %v1041 = vpop.permute.xlu0 %1040
    %1042 = vrot.lane.b32.xlu0 %v1002, 64
    %v1043 = vpop.permute.xlu0 %1042
    %1044 = vrot.lane.b32.xlu0 %v1003, 64
    %v1045 = vpop.permute.xlu0 %1044
    %1046 = vrot.lane.b32.xlu0 %v1004, 64
    %v1047 = vpop.permute.xlu0 %1046
    %1048 = vrot.lane.b32.xlu0 %v1005, 64
    %v1049 = vpop.permute.xlu0 %1048
    %1050 = vrot.lane.b32.xlu0 %v1006, 64
    %v1051 = vpop.permute.xlu0 %1050
    %1052 = vrot.lane.b32.xlu0 %v1007, 64
    %v1053 = vpop.permute.xlu0 %1052
    %1054 = vrot.lane.b32.xlu0 %v1008, 64
    %v1055 = vpop.permute.xlu0 %1054
    %1056 = vrot.lane.b32.xlu0 %v1009, 64
    %v1057 = vpop.permute.xlu0 %1056
    %1074 = vst.msk [vmem:[#allocation2 + $0x8] sm:$0xff] %vm496, %v1027
    %1075 = vst.msk [vmem:[#allocation2 + $0x28] sm:$0xff] %vm496, %v1029
    %1076 = vst.msk [vmem:[#allocation2 + $0x48] sm:$0xff] %vm496, %v1031
    %1077 = vst.msk [vmem:[#allocation2 + $0x68] sm:$0xff] %vm496, %v1033
    %1078 = vst.msk [vmem:[#allocation2 + $0x88] sm:$0xff] %vm496, %v1035
    %1079 = vst.msk [vmem:[#allocation2 + $0xa8] sm:$0xff] %vm496, %v1037
    %1080 = vst.msk [vmem:[#allocation2 + $0xc8] sm:$0xff] %vm496, %v1039
    %1081 = vst.msk [vmem:[#allocation2 + $0xe8] sm:$0xff] %vm496, %v1041
    %1082 = vst.msk [vmem:[#allocation2 + $0x108] sm:$0xff] %vm496, %v1043
    %1083 = vst.msk [vmem:[#allocation2 + $0x128] sm:$0xff] %vm496, %v1045
    %1084 = vst.msk [vmem:[#allocation2 + $0x148] sm:$0xff] %vm496, %v1047
    %1085 = vst.msk [vmem:[#allocation2 + $0x168] sm:$0xff] %vm496, %v1049
    %1086 = vst.msk [vmem:[#allocation2 + $0x188] sm:$0xff] %vm496, %v1051
    %1087 = vst.msk [vmem:[#allocation2 + $0x1a8] sm:$0xff] %vm496, %v1053
    %1088 = vst.msk [vmem:[#allocation2 + $0x1c8] sm:$0xff] %vm496, %v1055
    %1089 = vst.msk [vmem:[#allocation2 + $0x1e8] sm:$0xff] %vm496, %v1057
    %1090 = vset.pattern.permute.xlu0 7
    %1091 = vperm.xlu0 %1090, %v62
    %v1092 = vpop.permute.xlu0 %1091
    %1094 = vset.pattern.permute.xlu0 7
    %1095 = vperm.xlu0 %1094, %v63
    %v1096 = vpop.permute.xlu0 %1095
    %1098 = vset.pattern.permute.xlu0 7
    %1099 = vperm.xlu0 %1098, %v64
    %v1100 = vpop.permute.xlu0 %1099
    %1102 = vset.pattern.permute.xlu0 7
    %1103 = vperm.xlu0 %1102, %v65
    %v1104 = vpop.permute.xlu0 %1103
    %1106 = vset.pattern.permute.xlu0 7
    %1107 = vperm.xlu0 %1106, %v66
    %v1108 = vpop.permute.xlu0 %1107
    %1110 = vset.pattern.permute.xlu0 7
    %1111 = vperm.xlu0 %1110, %v67
    %v1112 = vpop.permute.xlu0 %1111
    %1114 = vset.pattern.permute.xlu0 7
    %1115 = vperm.xlu0 %1114, %v68
    %v1116 = vpop.permute.xlu0 %1115
    %1118 = vset.pattern.permute.xlu0 7
    %1119 = vperm.xlu0 %1118, %v69
    %v1120 = vpop.permute.xlu0 %1119
    %1122 = vset.pattern.permute.xlu0 7
    %1123 = vperm.xlu0 %1122, %v70
    %v1124 = vpop.permute.xlu0 %1123
    %1126 = vset.pattern.permute.xlu0 7
    %1127 = vperm.xlu0 %1126, %v71
    %v1128 = vpop.permute.xlu0 %1127
    %1130 = vset.pattern.permute.xlu0 7
    %1131 = vperm.xlu0 %1130, %v72
    %v1132 = vpop.permute.xlu0 %1131
    %1134 = vset.pattern.permute.xlu0 7
    %1135 = vperm.xlu0 %1134, %v73
    %v1136 = vpop.permute.xlu0 %1135
    %1138 = vset.pattern.permute.xlu0 7
    %1139 = vperm.xlu0 %1138, %v74
    %v1140 = vpop.permute.xlu0 %1139
    %1142 = vset.pattern.permute.xlu0 7
    %1143 = vperm.xlu0 %1142, %v75
    %v1144 = vpop.permute.xlu0 %1143
    %1146 = vset.pattern.permute.xlu0 7
    %1147 = vperm.xlu0 %1146, %v76
    %v1148 = vpop.permute.xlu0 %1147
    %1150 = vset.pattern.permute.xlu0 7
    %1151 = vperm.xlu0 %1150, %v77
    %v1152 = vpop.permute.xlu0 %1151
    %v1154 = vmul.f32 %v1092, %v46
    %v1155 = vmul.f32 %v1096, %v47
    %v1156 = vmul.f32 %v1100, %v48
    %v1157 = vmul.f32 %v1104, %v49
    %v1158 = vmul.f32 %v1108, %v50
    %v1159 = vmul.f32 %v1112, %v51
    %v1160 = vmul.f32 %v1116, %v52
    %v1161 = vmul.f32 %v1120, %v53
    %v1162 = vmul.f32 %v1124, %v54
    %v1163 = vmul.f32 %v1128, %v55
    %v1164 = vmul.f32 %v1132, %v56
    %v1165 = vmul.f32 %v1136, %v57
    %v1166 = vmul.f32 %v1140, %v58
    %v1167 = vmul.f32 %v1144, %v59
    %v1168 = vmul.f32 %v1148, %v60
    %v1169 = vmul.f32 %v1152, %v61
    %1186 = vrot.lane.b32.xlu0 %v1154, 96
    %v1187 = vpop.permute.xlu0 %1186
    %1188 = vrot.lane.b32.xlu0 %v1155, 96
    %v1189 = vpop.permute.xlu0 %1188
    %1190 = vrot.lane.b32.xlu0 %v1156, 96
    %v1191 = vpop.permute.xlu0 %1190
    %1192 = vrot.lane.b32.xlu0 %v1157, 96
    %v1193 = vpop.permute.xlu0 %1192
    %1194 = vrot.lane.b32.xlu0 %v1158, 96
    %v1195 = vpop.permute.xlu0 %1194
    %1196 = vrot.lane.b32.xlu0 %v1159, 96
    %v1197 = vpop.permute.xlu0 %1196
    %1198 = vrot.lane.b32.xlu0 %v1160, 96
    %v1199 = vpop.permute.xlu0 %1198
    %1200 = vrot.lane.b32.xlu0 %v1161, 96
    %v1201 = vpop.permute.xlu0 %1200
    %1202 = vrot.lane.b32.xlu0 %v1162, 96
    %v1203 = vpop.permute.xlu0 %1202
    %1204 = vrot.lane.b32.xlu0 %v1163, 96
    %v1205 = vpop.permute.xlu0 %1204
    %1206 = vrot.lane.b32.xlu0 %v1164, 96
    %v1207 = vpop.permute.xlu0 %1206
    %1208 = vrot.lane.b32.xlu0 %v1165, 96
    %v1209 = vpop.permute.xlu0 %1208
    %1210 = vrot.lane.b32.xlu0 %v1166, 96
    %v1211 = vpop.permute.xlu0 %1210
    %1212 = vrot.lane.b32.xlu0 %v1167, 96
    %v1213 = vpop.permute.xlu0 %1212
    %1214 = vrot.lane.b32.xlu0 %v1168, 96
    %v1215 = vpop.permute.xlu0 %1214
    %1216 = vrot.lane.b32.xlu0 %v1169, 96
    %v1217 = vpop.permute.xlu0 %1216
    %1234 = vst.msk [vmem:[#allocation2 + $0x8] sm:$0xff] %vm657, %v1187
    %1235 = vst.msk [vmem:[#allocation2 + $0x28] sm:$0xff] %vm657, %v1189
    %1236 = vst.msk [vmem:[#allocation2 + $0x48] sm:$0xff] %vm657, %v1191
    %1237 = vst.msk [vmem:[#allocation2 + $0x68] sm:$0xff] %vm657, %v1193
    %1238 = vst.msk [vmem:[#allocation2 + $0x88] sm:$0xff] %vm657, %v1195
    %1239 = vst.msk [vmem:[#allocation2 + $0xa8] sm:$0xff] %vm657, %v1197
    %1240 = vst.msk [vmem:[#allocation2 + $0xc8] sm:$0xff] %vm657, %v1199
    %1241 = vst.msk [vmem:[#allocation2 + $0xe8] sm:$0xff] %vm657, %v1201
    %1242 = vst.msk [vmem:[#allocation2 + $0x108] sm:$0xff] %vm657, %v1203
    %1243 = vst.msk [vmem:[#allocation2 + $0x128] sm:$0xff] %vm657, %v1205
    %1244 = vst.msk [vmem:[#allocation2 + $0x148] sm:$0xff] %vm657, %v1207
    %1245 = vst.msk [vmem:[#allocation2 + $0x168] sm:$0xff] %vm657, %v1209
    %1246 = vst.msk [vmem:[#allocation2 + $0x188] sm:$0xff] %vm657, %v1211
    %1247 = vst.msk [vmem:[#allocation2 + $0x1a8] sm:$0xff] %vm657, %v1213
    %1248 = vst.msk [vmem:[#allocation2 + $0x1c8] sm:$0xff] %vm657, %v1215
    %1249 = vst.msk [vmem:[#allocation2 + $0x1e8] sm:$0xff] %vm657, %v1217
    %1250 = vset.pattern.permute.xlu0 8
    %1251 = vperm.xlu0 %1250, %v62
    %v1252 = vpop.permute.xlu0 %1251
    %1254 = vset.pattern.permute.xlu0 8
    %1255 = vperm.xlu0 %1254, %v63
    %v1256 = vpop.permute.xlu0 %1255
    %1258 = vset.pattern.permute.xlu0 8
    %1259 = vperm.xlu0 %1258, %v64
    %v1260 = vpop.permute.xlu0 %1259
    %1262 = vset.pattern.permute.xlu0 8
    %1263 = vperm.xlu0 %1262, %v65
    %v1264 = vpop.permute.xlu0 %1263
    %1266 = vset.pattern.permute.xlu0 8
    %1267 = vperm.xlu0 %1266, %v66
    %v1268 = vpop.permute.xlu0 %1267
    %1270 = vset.pattern.permute.xlu0 8
    %1271 = vperm.xlu0 %1270, %v67
    %v1272 = vpop.permute.xlu0 %1271
    %1274 = vset.pattern.permute.xlu0 8
    %1275 = vperm.xlu0 %1274, %v68
    %v1276 = vpop.permute.xlu0 %1275
    %1278 = vset.pattern.permute.xlu0 8
    %1279 = vperm.xlu0 %1278, %v69
    %v1280 = vpop.permute.xlu0 %1279
    %1282 = vset.pattern.permute.xlu0 8
    %1283 = vperm.xlu0 %1282, %v70
    %v1284 = vpop.permute.xlu0 %1283
    %1286 = vset.pattern.permute.xlu0 8
    %1287 = vperm.xlu0 %1286, %v71
    %v1288 = vpop.permute.xlu0 %1287
    %1290 = vset.pattern.permute.xlu0 8
    %1291 = vperm.xlu0 %1290, %v72
    %v1292 = vpop.permute.xlu0 %1291
    %1294 = vset.pattern.permute.xlu0 8
    %1295 = vperm.xlu0 %1294, %v73
    %v1296 = vpop.permute.xlu0 %1295
    %1298 = vset.pattern.permute.xlu0 8
    %1299 = vperm.xlu0 %1298, %v74
    %v1300 = vpop.permute.xlu0 %1299
    %1302 = vset.pattern.permute.xlu0 8
    %1303 = vperm.xlu0 %1302, %v75
    %v1304 = vpop.permute.xlu0 %1303
    %1306 = vset.pattern.permute.xlu0 8
    %1307 = vperm.xlu0 %1306, %v76
    %v1308 = vpop.permute.xlu0 %1307
    %1310 = vset.pattern.permute.xlu0 8
    %1311 = vperm.xlu0 %1310, %v77
    %v1312 = vpop.permute.xlu0 %1311
    %v1314 = vmul.f32 %v1252, %v46
    %v1315 = vmul.f32 %v1256, %v47
    %v1316 = vmul.f32 %v1260, %v48
    %v1317 = vmul.f32 %v1264, %v49
    %v1318 = vmul.f32 %v1268, %v50
    %v1319 = vmul.f32 %v1272, %v51
    %v1320 = vmul.f32 %v1276, %v52
    %v1321 = vmul.f32 %v1280, %v53
    %v1322 = vmul.f32 %v1284, %v54
    %v1323 = vmul.f32 %v1288, %v55
    %v1324 = vmul.f32 %v1292, %v56
    %v1325 = vmul.f32 %v1296, %v57
    %v1326 = vmul.f32 %v1300, %v58
    %v1327 = vmul.f32 %v1304, %v59
    %v1328 = vmul.f32 %v1308, %v60
    %v1329 = vmul.f32 %v1312, %v61
    %1330 = vst.msk [vmem:[#allocation2 + $0x10] sm:$0xff] %vm174, %v1314
    %1331 = vst.msk [vmem:[#allocation2 + $0x30] sm:$0xff] %vm174, %v1315
    %1332 = vst.msk [vmem:[#allocation2 + $0x50] sm:$0xff] %vm174, %v1316
    %1333 = vst.msk [vmem:[#allocation2 + $0x70] sm:$0xff] %vm174, %v1317
    %1334 = vst.msk [vmem:[#allocation2 + $0x90] sm:$0xff] %vm174, %v1318
    %1335 = vst.msk [vmem:[#allocation2 + $0xb0] sm:$0xff] %vm174, %v1319
    %1336 = vst.msk [vmem:[#allocation2 + $0xd0] sm:$0xff] %vm174, %v1320
    %1337 = vst.msk [vmem:[#allocation2 + $0xf0] sm:$0xff] %vm174, %v1321
    %1338 = vst.msk [vmem:[#allocation2 + $0x110] sm:$0xff] %vm174, %v1322
    %1339 = vst.msk [vmem:[#allocation2 + $0x130] sm:$0xff] %vm174, %v1323
    %1340 = vst.msk [vmem:[#allocation2 + $0x150] sm:$0xff] %vm174, %v1324
    %1341 = vst.msk [vmem:[#allocation2 + $0x170] sm:$0xff] %vm174, %v1325
    %1342 = vst.msk [vmem:[#allocation2 + $0x190] sm:$0xff] %vm174, %v1326
    %1343 = vst.msk [vmem:[#allocation2 + $0x1b0] sm:$0xff] %vm174, %v1327
    %1344 = vst.msk [vmem:[#allocation2 + $0x1d0] sm:$0xff] %vm174, %v1328
    %1345 = vst.msk [vmem:[#allocation2 + $0x1f0] sm:$0xff] %vm174, %v1329
    %1346 = vset.pattern.permute.xlu0 9
    %1347 = vperm.xlu0 %1346, %v62
    %v1348 = vpop.permute.xlu0 %1347
    %1350 = vset.pattern.permute.xlu0 9
    %1351 = vperm.xlu0 %1350, %v63
    %v1352 = vpop.permute.xlu0 %1351
    %1354 = vset.pattern.permute.xlu0 9
    %1355 = vperm.xlu0 %1354, %v64
    %v1356 = vpop.permute.xlu0 %1355
    %1358 = vset.pattern.permute.xlu0 9
    %1359 = vperm.xlu0 %1358, %v65
    %v1360 = vpop.permute.xlu0 %1359
    %1362 = vset.pattern.permute.xlu0 9
    %1363 = vperm.xlu0 %1362, %v66
    %v1364 = vpop.permute.xlu0 %1363
    %1366 = vset.pattern.permute.xlu0 9
    %1367 = vperm.xlu0 %1366, %v67
    %v1368 = vpop.permute.xlu0 %1367
    %1370 = vset.pattern.permute.xlu0 9
    %1371 = vperm.xlu0 %1370, %v68
    %v1372 = vpop.permute.xlu0 %1371
    %1374 = vset.pattern.permute.xlu0 9
    %1375 = vperm.xlu0 %1374, %v69
    %v1376 = vpop.permute.xlu0 %1375
    %1378 = vset.pattern.permute.xlu0 9
    %1379 = vperm.xlu0 %1378, %v70
    %v1380 = vpop.permute.xlu0 %1379
    %1382 = vset.pattern.permute.xlu0 9
    %1383 = vperm.xlu0 %1382, %v71
    %v1384 = vpop.permute.xlu0 %1383
    %1386 = vset.pattern.permute.xlu0 9
    %1387 = vperm.xlu0 %1386, %v72
    %v1388 = vpop.permute.xlu0 %1387
    %1390 = vset.pattern.permute.xlu0 9
    %1391 = vperm.xlu0 %1390, %v73
    %v1392 = vpop.permute.xlu0 %1391
    %1394 = vset.pattern.permute.xlu0 9
    %1395 = vperm.xlu0 %1394, %v74
    %v1396 = vpop.permute.xlu0 %1395
    %1398 = vset.pattern.permute.xlu0 9
    %1399 = vperm.xlu0 %1398, %v75
    %v1400 = vpop.permute.xlu0 %1399
    %1402 = vset.pattern.permute.xlu0 9
    %1403 = vperm.xlu0 %1402, %v76
    %v1404 = vpop.permute.xlu0 %1403
    %1406 = vset.pattern.permute.xlu0 9
    %1407 = vperm.xlu0 %1406, %v77
    %v1408 = vpop.permute.xlu0 %1407
    %v1410 = vmul.f32 %v1348, %v46
    %v1411 = vmul.f32 %v1352, %v47
    %v1412 = vmul.f32 %v1356, %v48
    %v1413 = vmul.f32 %v1360, %v49
    %v1414 = vmul.f32 %v1364, %v50
    %v1415 = vmul.f32 %v1368, %v51
    %v1416 = vmul.f32 %v1372, %v52
    %v1417 = vmul.f32 %v1376, %v53
    %v1418 = vmul.f32 %v1380, %v54
    %v1419 = vmul.f32 %v1384, %v55
    %v1420 = vmul.f32 %v1388, %v56
    %v1421 = vmul.f32 %v1392, %v57
    %v1422 = vmul.f32 %v1396, %v58
    %v1423 = vmul.f32 %v1400, %v59
    %v1424 = vmul.f32 %v1404, %v60
    %v1425 = vmul.f32 %v1408, %v61
    %1442 = vrot.lane.b32.xlu0 %v1410, 32
    %v1443 = vpop.permute.xlu0 %1442
    %1444 = vrot.lane.b32.xlu0 %v1411, 32
    %v1445 = vpop.permute.xlu0 %1444
    %1446 = vrot.lane.b32.xlu0 %v1412, 32
    %v1447 = vpop.permute.xlu0 %1446
    %1448 = vrot.lane.b32.xlu0 %v1413, 32
    %v1449 = vpop.permute.xlu0 %1448
    %1450 = vrot.lane.b32.xlu0 %v1414, 32
    %v1451 = vpop.permute.xlu0 %1450
    %1452 = vrot.lane.b32.xlu0 %v1415, 32
    %v1453 = vpop.permute.xlu0 %1452
    %1454 = vrot.lane.b32.xlu0 %v1416, 32
    %v1455 = vpop.permute.xlu0 %1454
    %1456 = vrot.lane.b32.xlu0 %v1417, 32
    %v1457 = vpop.permute.xlu0 %1456
    %1458 = vrot.lane.b32.xlu0 %v1418, 32
    %v1459 = vpop.permute.xlu0 %1458
    %1460 = vrot.lane.b32.xlu0 %v1419, 32
    %v1461 = vpop.permute.xlu0 %1460
    %1462 = vrot.lane.b32.xlu0 %v1420, 32
    %v1463 = vpop.permute.xlu0 %1462
    %1464 = vrot.lane.b32.xlu0 %v1421, 32
    %v1465 = vpop.permute.xlu0 %1464
    %1466 = vrot.lane.b32.xlu0 %v1422, 32
    %v1467 = vpop.permute.xlu0 %1466
    %1468 = vrot.lane.b32.xlu0 %v1423, 32
    %v1469 = vpop.permute.xlu0 %1468
    %1470 = vrot.lane.b32.xlu0 %v1424, 32
    %v1471 = vpop.permute.xlu0 %1470
    %1472 = vrot.lane.b32.xlu0 %v1425, 32
    %v1473 = vpop.permute.xlu0 %1472
    %1490 = vst.msk [vmem:[#allocation2 + $0x10] sm:$0xff] %vm335, %v1443
    %1491 = vst.msk [vmem:[#allocation2 + $0x30] sm:$0xff] %vm335, %v1445
    %1492 = vst.msk [vmem:[#allocation2 + $0x50] sm:$0xff] %vm335, %v1447
    %1493 = vst.msk [vmem:[#allocation2 + $0x70] sm:$0xff] %vm335, %v1449
    %1494 = vst.msk [vmem:[#allocation2 + $0x90] sm:$0xff] %vm335, %v1451
    %1495 = vst.msk [vmem:[#allocation2 + $0xb0] sm:$0xff] %vm335, %v1453
    %1496 = vst.msk [vmem:[#allocation2 + $0xd0] sm:$0xff] %vm335, %v1455
    %1497 = vst.msk [vmem:[#allocation2 + $0xf0] sm:$0xff] %vm335, %v1457
    %1498 = vst.msk [vmem:[#allocation2 + $0x110] sm:$0xff] %vm335, %v1459
    %1499 = vst.msk [vmem:[#allocation2 + $0x130] sm:$0xff] %vm335, %v1461
    %1500 = vst.msk [vmem:[#allocation2 + $0x150] sm:$0xff] %vm335, %v1463
    %1501 = vst.msk [vmem:[#allocation2 + $0x170] sm:$0xff] %vm335, %v1465
    %1502 = vst.msk [vmem:[#allocation2 + $0x190] sm:$0xff] %vm335, %v1467
    %1503 = vst.msk [vmem:[#allocation2 + $0x1b0] sm:$0xff] %vm335, %v1469
    %1504 = vst.msk [vmem:[#allocation2 + $0x1d0] sm:$0xff] %vm335, %v1471
    %1505 = vst.msk [vmem:[#allocation2 + $0x1f0] sm:$0xff] %vm335, %v1473
    %1506 = vset.pattern.permute.xlu0 10
    %1507 = vperm.xlu0 %1506, %v62
    %v1508 = vpop.permute.xlu0 %1507
    %1510 = vset.pattern.permute.xlu0 10
    %1511 = vperm.xlu0 %1510, %v63
    %v1512 = vpop.permute.xlu0 %1511
    %1514 = vset.pattern.permute.xlu0 10
    %1515 = vperm.xlu0 %1514, %v64
    %v1516 = vpop.permute.xlu0 %1515
    %1518 = vset.pattern.permute.xlu0 10
    %1519 = vperm.xlu0 %1518, %v65
    %v1520 = vpop.permute.xlu0 %1519
    %1522 = vset.pattern.permute.xlu0 10
    %1523 = vperm.xlu0 %1522, %v66
    %v1524 = vpop.permute.xlu0 %1523
    %1526 = vset.pattern.permute.xlu0 10
    %1527 = vperm.xlu0 %1526, %v67
    %v1528 = vpop.permute.xlu0 %1527
    %1530 = vset.pattern.permute.xlu0 10
    %1531 = vperm.xlu0 %1530, %v68
    %v1532 = vpop.permute.xlu0 %1531
    %1534 = vset.pattern.permute.xlu0 10
    %1535 = vperm.xlu0 %1534, %v69
    %v1536 = vpop.permute.xlu0 %1535
    %1538 = vset.pattern.permute.xlu0 10
    %1539 = vperm.xlu0 %1538, %v70
    %v1540 = vpop.permute.xlu0 %1539
    %1542 = vset.pattern.permute.xlu0 10
    %1543 = vperm.xlu0 %1542, %v71
    %v1544 = vpop.permute.xlu0 %1543
    %1546 = vset.pattern.permute.xlu0 10
    %1547 = vperm.xlu0 %1546, %v72
    %v1548 = vpop.permute.xlu0 %1547
    %1550 = vset.pattern.permute.xlu0 10
    %1551 = vperm.xlu0 %1550, %v73
    %v1552 = vpop.permute.xlu0 %1551
    %1554 = vset.pattern.permute.xlu0 10
    %1555 = vperm.xlu0 %1554, %v74
    %v1556 = vpop.permute.xlu0 %1555
    %1558 = vset.pattern.permute.xlu0 10
    %1559 = vperm.xlu0 %1558, %v75
    %v1560 = vpop.permute.xlu0 %1559
    %1562 = vset.pattern.permute.xlu0 10
    %1563 = vperm.xlu0 %1562, %v76
    %v1564 = vpop.permute.xlu0 %1563
    %1566 = vset.pattern.permute.xlu0 10
    %1567 = vperm.xlu0 %1566, %v77
    %v1568 = vpop.permute.xlu0 %1567
    %v1570 = vmul.f32 %v1508, %v46
    %v1571 = vmul.f32 %v1512, %v47
    %v1572 = vmul.f32 %v1516, %v48
    %v1573 = vmul.f32 %v1520, %v49
    %v1574 = vmul.f32 %v1524, %v50
    %v1575 = vmul.f32 %v1528, %v51
    %v1576 = vmul.f32 %v1532, %v52
    %v1577 = vmul.f32 %v1536, %v53
    %v1578 = vmul.f32 %v1540, %v54
    %v1579 = vmul.f32 %v1544, %v55
    %v1580 = vmul.f32 %v1548, %v56
    %v1581 = vmul.f32 %v1552, %v57
    %v1582 = vmul.f32 %v1556, %v58
    %v1583 = vmul.f32 %v1560, %v59
    %v1584 = vmul.f32 %v1564, %v60
    %v1585 = vmul.f32 %v1568, %v61
    %1602 = vrot.lane.b32.xlu0 %v1570, 64
    %v1603 = vpop.permute.xlu0 %1602
    %1604 = vrot.lane.b32.xlu0 %v1571, 64
    %v1605 = vpop.permute.xlu0 %1604
    %1606 = vrot.lane.b32.xlu0 %v1572, 64
    %v1607 = vpop.permute.xlu0 %1606
    %1608 = vrot.lane.b32.xlu0 %v1573, 64
    %v1609 = vpop.permute.xlu0 %1608
    %1610 = vrot.lane.b32.xlu0 %v1574, 64
    %v1611 = vpop.permute.xlu0 %1610
    %1612 = vrot.lane.b32.xlu0 %v1575, 64
    %v1613 = vpop.permute.xlu0 %1612
    %1614 = vrot.lane.b32.xlu0 %v1576, 64
    %v1615 = vpop.permute.xlu0 %1614
    %1616 = vrot.lane.b32.xlu0 %v1577, 64
    %v1617 = vpop.permute.xlu0 %1616
    %1618 = vrot.lane.b32.xlu0 %v1578, 64
    %v1619 = vpop.permute.xlu0 %1618
    %1620 = vrot.lane.b32.xlu0 %v1579, 64
    %v1621 = vpop.permute.xlu0 %1620
    %1622 = vrot.lane.b32.xlu0 %v1580, 64
    %v1623 = vpop.permute.xlu0 %1622
    %1624 = vrot.lane.b32.xlu0 %v1581, 64
    %v1625 = vpop.permute.xlu0 %1624
    %1626 = vrot.lane.b32.xlu0 %v1582, 64
    %v1627 = vpop.permute.xlu0 %1626
    %1628 = vrot.lane.b32.xlu0 %v1583, 64
    %v1629 = vpop.permute.xlu0 %1628
    %1630 = vrot.lane.b32.xlu0 %v1584, 64
    %v1631 = vpop.permute.xlu0 %1630
    %1632 = vrot.lane.b32.xlu0 %v1585, 64
    %v1633 = vpop.permute.xlu0 %1632
    %1650 = vst.msk [vmem:[#allocation2 + $0x10] sm:$0xff] %vm496, %v1603
    %1651 = vst.msk [vmem:[#allocation2 + $0x30] sm:$0xff] %vm496, %v1605
    %1652 = vst.msk [vmem:[#allocation2 + $0x50] sm:$0xff] %vm496, %v1607
    %1653 = vst.msk [vmem:[#allocation2 + $0x70] sm:$0xff] %vm496, %v1609
    %1654 = vst.msk [vmem:[#allocation2 + $0x90] sm:$0xff] %vm496, %v1611
    %1655 = vst.msk [vmem:[#allocation2 + $0xb0] sm:$0xff] %vm496, %v1613
    %1656 = vst.msk [vmem:[#allocation2 + $0xd0] sm:$0xff] %vm496, %v1615
    %1657 = vst.msk [vmem:[#allocation2 + $0xf0] sm:$0xff] %vm496, %v1617
    %1658 = vst.msk [vmem:[#allocation2 + $0x110] sm:$0xff] %vm496, %v1619
    %1659 = vst.msk [vmem:[#allocation2 + $0x130] sm:$0xff] %vm496, %v1621
    %1660 = vst.msk [vmem:[#allocation2 + $0x150] sm:$0xff] %vm496, %v1623
    %1661 = vst.msk [vmem:[#allocation2 + $0x170] sm:$0xff] %vm496, %v1625
    %1662 = vst.msk [vmem:[#allocation2 + $0x190] sm:$0xff] %vm496, %v1627
    %1663 = vst.msk [vmem:[#allocation2 + $0x1b0] sm:$0xff] %vm496, %v1629
    %1664 = vst.msk [vmem:[#allocation2 + $0x1d0] sm:$0xff] %vm496, %v1631
    %1665 = vst.msk [vmem:[#allocation2 + $0x1f0] sm:$0xff] %vm496, %v1633
    %1666 = vset.pattern.permute.xlu0 11
    %1667 = vperm.xlu0 %1666, %v62
    %v1668 = vpop.permute.xlu0 %1667
    %1670 = vset.pattern.permute.xlu0 11
    %1671 = vperm.xlu0 %1670, %v63
    %v1672 = vpop.permute.xlu0 %1671
    %1674 = vset.pattern.permute.xlu0 11
    %1675 = vperm.xlu0 %1674, %v64
    %v1676 = vpop.permute.xlu0 %1675
    %1678 = vset.pattern.permute.xlu0 11
    %1679 = vperm.xlu0 %1678, %v65
    %v1680 = vpop.permute.xlu0 %1679
    %1682 = vset.pattern.permute.xlu0 11
    %1683 = vperm.xlu0 %1682, %v66
    %v1684 = vpop.permute.xlu0 %1683
    %1686 = vset.pattern.permute.xlu0 11
    %1687 = vperm.xlu0 %1686, %v67
    %v1688 = vpop.permute.xlu0 %1687
    %1690 = vset.pattern.permute.xlu0 11
    %1691 = vperm.xlu0 %1690, %v68
    %v1692 = vpop.permute.xlu0 %1691
    %1694 = vset.pattern.permute.xlu0 11
    %1695 = vperm.xlu0 %1694, %v69
    %v1696 = vpop.permute.xlu0 %1695
    %1698 = vset.pattern.permute.xlu0 11
    %1699 = vperm.xlu0 %1698, %v70
    %v1700 = vpop.permute.xlu0 %1699
    %1702 = vset.pattern.permute.xlu0 11
    %1703 = vperm.xlu0 %1702, %v71
    %v1704 = vpop.permute.xlu0 %1703
    %1706 = vset.pattern.permute.xlu0 11
    %1707 = vperm.xlu0 %1706, %v72
    %v1708 = vpop.permute.xlu0 %1707
    %1710 = vset.pattern.permute.xlu0 11
    %1711 = vperm.xlu0 %1710, %v73
    %v1712 = vpop.permute.xlu0 %1711
    %1714 = vset.pattern.permute.xlu0 11
    %1715 = vperm.xlu0 %1714, %v74
    %v1716 = vpop.permute.xlu0 %1715
    %1718 = vset.pattern.permute.xlu0 11
    %1719 = vperm.xlu0 %1718, %v75
    %v1720 = vpop.permute.xlu0 %1719
    %1722 = vset.pattern.permute.xlu0 11
    %1723 = vperm.xlu0 %1722, %v76
    %v1724 = vpop.permute.xlu0 %1723
    %1726 = vset.pattern.permute.xlu0 11
    %1727 = vperm.xlu0 %1726, %v77
    %v1728 = vpop.permute.xlu0 %1727
    %v1730 = vmul.f32 %v1668, %v46
    %v1731 = vmul.f32 %v1672, %v47
    %v1732 = vmul.f32 %v1676, %v48
    %v1733 = vmul.f32 %v1680, %v49
    %v1734 = vmul.f32 %v1684, %v50
    %v1735 = vmul.f32 %v1688, %v51
    %v1736 = vmul.f32 %v1692, %v52
    %v1737 = vmul.f32 %v1696, %v53
    %v1738 = vmul.f32 %v1700, %v54
    %v1739 = vmul.f32 %v1704, %v55
    %v1740 = vmul.f32 %v1708, %v56
    %v1741 = vmul.f32 %v1712, %v57
    %v1742 = vmul.f32 %v1716, %v58
    %v1743 = vmul.f32 %v1720, %v59
    %v1744 = vmul.f32 %v1724, %v60
    %v1745 = vmul.f32 %v1728, %v61
    %1762 = vrot.lane.b32.xlu0 %v1730, 96
    %v1763 = vpop.permute.xlu0 %1762
    %1764 = vrot.lane.b32.xlu0 %v1731, 96
    %v1765 = vpop.permute.xlu0 %1764
    %1766 = vrot.lane.b32.xlu0 %v1732, 96
    %v1767 = vpop.permute.xlu0 %1766
    %1768 = vrot.lane.b32.xlu0 %v1733, 96
    %v1769 = vpop.permute.xlu0 %1768
    %1770 = vrot.lane.b32.xlu0 %v1734, 96
    %v1771 = vpop.permute.xlu0 %1770
    %1772 = vrot.lane.b32.xlu0 %v1735, 96
    %v1773 = vpop.permute.xlu0 %1772
    %1774 = vrot.lane.b32.xlu0 %v1736, 96
    %v1775 = vpop.permute.xlu0 %1774
    %1776 = vrot.lane.b32.xlu0 %v1737, 96
    %v1777 = vpop.permute.xlu0 %1776
    %1778 = vrot.lane.b32.xlu0 %v1738, 96
    %v1779 = vpop.permute.xlu0 %1778
    %1780 = vrot.lane.b32.xlu0 %v1739, 96
    %v1781 = vpop.permute.xlu0 %1780
    %1782 = vrot.lane.b32.xlu0 %v1740, 96
    %v1783 = vpop.permute.xlu0 %1782
    %1784 = vrot.lane.b32.xlu0 %v1741, 96
    %v1785 = vpop.permute.xlu0 %1784
    %1786 = vrot.lane.b32.xlu0 %v1742, 96
    %v1787 = vpop.permute.xlu0 %1786
    %1788 = vrot.lane.b32.xlu0 %v1743, 96
    %v1789 = vpop.permute.xlu0 %1788
    %1790 = vrot.lane.b32.xlu0 %v1744, 96
    %v1791 = vpop.permute.xlu0 %1790
    %1792 = vrot.lane.b32.xlu0 %v1745, 96
    %v1793 = vpop.permute.xlu0 %1792
    %1810 = vst.msk [vmem:[#allocation2 + $0x10] sm:$0xff] %vm657, %v1763
    %1811 = vst.msk [vmem:[#allocation2 + $0x30] sm:$0xff] %vm657, %v1765
    %1812 = vst.msk [vmem:[#allocation2 + $0x50] sm:$0xff] %vm657, %v1767
    %1813 = vst.msk [vmem:[#allocation2 + $0x70] sm:$0xff] %vm657, %v1769
    %1814 = vst.msk [vmem:[#allocation2 + $0x90] sm:$0xff] %vm657, %v1771
    %1815 = vst.msk [vmem:[#allocation2 + $0xb0] sm:$0xff] %vm657, %v1773
    %1816 = vst.msk [vmem:[#allocation2 + $0xd0] sm:$0xff] %vm657, %v1775
    %1817 = vst.msk [vmem:[#allocation2 + $0xf0] sm:$0xff] %vm657, %v1777
    %1818 = vst.msk [vmem:[#allocation2 + $0x110] sm:$0xff] %vm657, %v1779
    %1819 = vst.msk [vmem:[#allocation2 + $0x130] sm:$0xff] %vm657, %v1781
    %1820 = vst.msk [vmem:[#allocation2 + $0x150] sm:$0xff] %vm657, %v1783
    %1821 = vst.msk [vmem:[#allocation2 + $0x170] sm:$0xff] %vm657, %v1785
    %1822 = vst.msk [vmem:[#allocation2 + $0x190] sm:$0xff] %vm657, %v1787
    %1823 = vst.msk [vmem:[#allocation2 + $0x1b0] sm:$0xff] %vm657, %v1789
    %1824 = vst.msk [vmem:[#allocation2 + $0x1d0] sm:$0xff] %vm657, %v1791
    %1825 = vst.msk [vmem:[#allocation2 + $0x1f0] sm:$0xff] %vm657, %v1793
    %1826 = vset.pattern.permute.xlu0 12
    %1827 = vperm.xlu0 %1826, %v62
    %v1828 = vpop.permute.xlu0 %1827
    %1830 = vset.pattern.permute.xlu0 12
    %1831 = vperm.xlu0 %1830, %v63
    %v1832 = vpop.permute.xlu0 %1831
    %1834 = vset.pattern.permute.xlu0 12
    %1835 = vperm.xlu0 %1834, %v64
    %v1836 = vpop.permute.xlu0 %1835
    %1838 = vset.pattern.permute.xlu0 12
    %1839 = vperm.xlu0 %1838, %v65
    %v1840 = vpop.permute.xlu0 %1839
    %1842 = vset.pattern.permute.xlu0 12
    %1843 = vperm.xlu0 %1842, %v66
    %v1844 = vpop.permute.xlu0 %1843
    %1846 = vset.pattern.permute.xlu0 12
    %1847 = vperm.xlu0 %1846, %v67
    %v1848 = vpop.permute.xlu0 %1847
    %1850 = vset.pattern.permute.xlu0 12
    %1851 = vperm.xlu0 %1850, %v68
    %v1852 = vpop.permute.xlu0 %1851
    %1854 = vset.pattern.permute.xlu0 12
    %1855 = vperm.xlu0 %1854, %v69
    %v1856 = vpop.permute.xlu0 %1855
    %1858 = vset.pattern.permute.xlu0 12
    %1859 = vperm.xlu0 %1858, %v70
    %v1860 = vpop.permute.xlu0 %1859
    %1862 = vset.pattern.permute.xlu0 12
    %1863 = vperm.xlu0 %1862, %v71
    %v1864 = vpop.permute.xlu0 %1863
    %1866 = vset.pattern.permute.xlu0 12
    %1867 = vperm.xlu0 %1866, %v72
    %v1868 = vpop.permute.xlu0 %1867
    %1870 = vset.pattern.permute.xlu0 12
    %1871 = vperm.xlu0 %1870, %v73
    %v1872 = vpop.permute.xlu0 %1871
    %1874 = vset.pattern.permute.xlu0 12
    %1875 = vperm.xlu0 %1874, %v74
    %v1876 = vpop.permute.xlu0 %1875
    %1878 = vset.pattern.permute.xlu0 12
    %1879 = vperm.xlu0 %1878, %v75
    %v1880 = vpop.permute.xlu0 %1879
    %1882 = vset.pattern.permute.xlu0 12
    %1883 = vperm.xlu0 %1882, %v76
    %v1884 = vpop.permute.xlu0 %1883
    %1886 = vset.pattern.permute.xlu0 12
    %1887 = vperm.xlu0 %1886, %v77
    %v1888 = vpop.permute.xlu0 %1887
    %v1890 = vmul.f32 %v1828, %v46
    %v1891 = vmul.f32 %v1832, %v47
    %v1892 = vmul.f32 %v1836, %v48
    %v1893 = vmul.f32 %v1840, %v49
    %v1894 = vmul.f32 %v1844, %v50
    %v1895 = vmul.f32 %v1848, %v51
    %v1896 = vmul.f32 %v1852, %v52
    %v1897 = vmul.f32 %v1856, %v53
    %v1898 = vmul.f32 %v1860, %v54
    %v1899 = vmul.f32 %v1864, %v55
    %v1900 = vmul.f32 %v1868, %v56
    %v1901 = vmul.f32 %v1872, %v57
    %v1902 = vmul.f32 %v1876, %v58
    %v1903 = vmul.f32 %v1880, %v59
    %v1904 = vmul.f32 %v1884, %v60
    %v1905 = vmul.f32 %v1888, %v61
    %1906 = vst.msk [vmem:[#allocation2 + $0x18] sm:$0xff] %vm174, %v1890
    %1907 = vst.msk [vmem:[#allocation2 + $0x38] sm:$0xff] %vm174, %v1891
    %1908 = vst.msk [vmem:[#allocation2 + $0x58] sm:$0xff] %vm174, %v1892
    %1909 = vst.msk [vmem:[#allocation2 + $0x78] sm:$0xff] %vm174, %v1893
    %1910 = vst.msk [vmem:[#allocation2 + $0x98] sm:$0xff] %vm174, %v1894
    %1911 = vst.msk [vmem:[#allocation2 + $0xb8] sm:$0xff] %vm174, %v1895
    %1912 = vst.msk [vmem:[#allocation2 + $0xd8] sm:$0xff] %vm174, %v1896
    %1913 = vst.msk [vmem:[#allocation2 + $0xf8] sm:$0xff] %vm174, %v1897
    %1914 = vst.msk [vmem:[#allocation2 + $0x118] sm:$0xff] %vm174, %v1898
    %1915 = vst.msk [vmem:[#allocation2 + $0x138] sm:$0xff] %vm174, %v1899
    %1916 = vst.msk [vmem:[#allocation2 + $0x158] sm:$0xff] %vm174, %v1900
    %1917 = vst.msk [vmem:[#allocation2 + $0x178] sm:$0xff] %vm174, %v1901
    %1918 = vst.msk [vmem:[#allocation2 + $0x198] sm:$0xff] %vm174, %v1902
    %1919 = vst.msk [vmem:[#allocation2 + $0x1b8] sm:$0xff] %vm174, %v1903
    %1920 = vst.msk [vmem:[#allocation2 + $0x1d8] sm:$0xff] %vm174, %v1904
    %1921 = vst.msk [vmem:[#allocation2 + $0x1f8] sm:$0xff] %vm174, %v1905
    %1922 = vset.pattern.permute.xlu0 13
    %1923 = vperm.xlu0 %1922, %v62
    %v1924 = vpop.permute.xlu0 %1923
    %1926 = vset.pattern.permute.xlu0 13
    %1927 = vperm.xlu0 %1926, %v63
    %v1928 = vpop.permute.xlu0 %1927
    %1930 = vset.pattern.permute.xlu0 13
    %1931 = vperm.xlu0 %1930, %v64
    %v1932 = vpop.permute.xlu0 %1931
    %1934 = vset.pattern.permute.xlu0 13
    %1935 = vperm.xlu0 %1934, %v65
    %v1936 = vpop.permute.xlu0 %1935
    %1938 = vset.pattern.permute.xlu0 13
    %1939 = vperm.xlu0 %1938, %v66
    %v1940 = vpop.permute.xlu0 %1939
    %1942 = vset.pattern.permute.xlu0 13
    %1943 = vperm.xlu0 %1942, %v67
    %v1944 = vpop.permute.xlu0 %1943
    %1946 = vset.pattern.permute.xlu0 13
    %1947 = vperm.xlu0 %1946, %v68
    %v1948 = vpop.permute.xlu0 %1947
    %1950 = vset.pattern.permute.xlu0 13
    %1951 = vperm.xlu0 %1950, %v69
    %v1952 = vpop.permute.xlu0 %1951
    %1954 = vset.pattern.permute.xlu0 13
    %1955 = vperm.xlu0 %1954, %v70
    %v1956 = vpop.permute.xlu0 %1955
    %1958 = vset.pattern.permute.xlu0 13
    %1959 = vperm.xlu0 %1958, %v71
    %v1960 = vpop.permute.xlu0 %1959
    %1962 = vset.pattern.permute.xlu0 13
    %1963 = vperm.xlu0 %1962, %v72
    %v1964 = vpop.permute.xlu0 %1963
    %1966 = vset.pattern.permute.xlu0 13
    %1967 = vperm.xlu0 %1966, %v73
    %v1968 = vpop.permute.xlu0 %1967
    %1970 = vset.pattern.permute.xlu0 13
    %1971 = vperm.xlu0 %1970, %v74
    %v1972 = vpop.permute.xlu0 %1971
    %1974 = vset.pattern.permute.xlu0 13
    %1975 = vperm.xlu0 %1974, %v75
    %v1976 = vpop.permute.xlu0 %1975
    %1978 = vset.pattern.permute.xlu0 13
    %1979 = vperm.xlu0 %1978, %v76
    %v1980 = vpop.permute.xlu0 %1979
    %1982 = vset.pattern.permute.xlu0 13
    %1983 = vperm.xlu0 %1982, %v77
    %v1984 = vpop.permute.xlu0 %1983
    %v1986 = vmul.f32 %v1924, %v46
    %v1987 = vmul.f32 %v1928, %v47
    %v1988 = vmul.f32 %v1932, %v48
    %v1989 = vmul.f32 %v1936, %v49
    %v1990 = vmul.f32 %v1940, %v50
    %v1991 = vmul.f32 %v1944, %v51
    %v1992 = vmul.f32 %v1948, %v52
    %v1993 = vmul.f32 %v1952, %v53
    %v1994 = vmul.f32 %v1956, %v54
    %v1995 = vmul.f32 %v1960, %v55
    %v1996 = vmul.f32 %v1964, %v56
    %v1997 = vmul.f32 %v1968, %v57
    %v1998 = vmul.f32 %v1972, %v58
    %v1999 = vmul.f32 %v1976, %v59
    %v2000 = vmul.f32 %v1980, %v60
    %v2001 = vmul.f32 %v1984, %v61
    %2018 = vrot.lane.b32.xlu0 %v1986, 32
    %v2019 = vpop.permute.xlu0 %2018
    %2020 = vrot.lane.b32.xlu0 %v1987, 32
    %v2021 = vpop.permute.xlu0 %2020
    %2022 = vrot.lane.b32.xlu0 %v1988, 32
    %v2023 = vpop.permute.xlu0 %2022
    %2024 = vrot.lane.b32.xlu0 %v1989, 32
    %v2025 = vpop.permute.xlu0 %2024
    %2026 = vrot.lane.b32.xlu0 %v1990, 32
    %v2027 = vpop.permute.xlu0 %2026
    %2028 = vrot.lane.b32.xlu0 %v1991, 32
    %v2029 = vpop.permute.xlu0 %2028
    %2030 = vrot.lane.b32.xlu0 %v1992, 32
    %v2031 = vpop.permute.xlu0 %2030
    %2032 = vrot.lane.b32.xlu0 %v1993, 32
    %v2033 = vpop.permute.xlu0 %2032
    %2034 = vrot.lane.b32.xlu0 %v1994, 32
    %v2035 = vpop.permute.xlu0 %2034
    %2036 = vrot.lane.b32.xlu0 %v1995, 32
    %v2037 = vpop.permute.xlu0 %2036
    %2038 = vrot.lane.b32.xlu0 %v1996, 32
    %v2039 = vpop.permute.xlu0 %2038
    %2040 = vrot.lane.b32.xlu0 %v1997, 32
    %v2041 = vpop.permute.xlu0 %2040
    %2042 = vrot.lane.b32.xlu0 %v1998, 32
    %v2043 = vpop.permute.xlu0 %2042
    %2044 = vrot.lane.b32.xlu0 %v1999, 32
    %v2045 = vpop.permute.xlu0 %2044
    %2046 = vrot.lane.b32.xlu0 %v2000, 32
    %v2047 = vpop.permute.xlu0 %2046
    %2048 = vrot.lane.b32.xlu0 %v2001, 32
    %v2049 = vpop.permute.xlu0 %2048
    %2066 = vst.msk [vmem:[#allocation2 + $0x18] sm:$0xff] %vm335, %v2019
    %2067 = vst.msk [vmem:[#allocation2 + $0x38] sm:$0xff] %vm335, %v2021
    %2068 = vst.msk [vmem:[#allocation2 + $0x58] sm:$0xff] %vm335, %v2023
    %2069 = vst.msk [vmem:[#allocation2 + $0x78] sm:$0xff] %vm335, %v2025
    %2070 = vst.msk [vmem:[#allocation2 + $0x98] sm:$0xff] %vm335, %v2027
    %2071 = vst.msk [vmem:[#allocation2 + $0xb8] sm:$0xff] %vm335, %v2029
    %2072 = vst.msk [vmem:[#allocation2 + $0xd8] sm:$0xff] %vm335, %v2031
    %2073 = vst.msk [vmem:[#allocation2 + $0xf8] sm:$0xff] %vm335, %v2033
    %2074 = vst.msk [vmem:[#allocation2 + $0x118] sm:$0xff] %vm335, %v2035
    %2075 = vst.msk [vmem:[#allocation2 + $0x138] sm:$0xff] %vm335, %v2037
    %2076 = vst.msk [vmem:[#allocation2 + $0x158] sm:$0xff] %vm335, %v2039
    %2077 = vst.msk [vmem:[#allocation2 + $0x178] sm:$0xff] %vm335, %v2041
    %2078 = vst.msk [vmem:[#allocation2 + $0x198] sm:$0xff] %vm335, %v2043
    %2079 = vst.msk [vmem:[#allocation2 + $0x1b8] sm:$0xff] %vm335, %v2045
    %2080 = vst.msk [vmem:[#allocation2 + $0x1d8] sm:$0xff] %vm335, %v2047
    %2081 = vst.msk [vmem:[#allocation2 + $0x1f8] sm:$0xff] %vm335, %v2049
    %2082 = vset.pattern.permute.xlu0 14
    %2083 = vperm.xlu0 %2082, %v62
    %v2084 = vpop.permute.xlu0 %2083
    %2086 = vset.pattern.permute.xlu0 14
    %2087 = vperm.xlu0 %2086, %v63
    %v2088 = vpop.permute.xlu0 %2087
    %2090 = vset.pattern.permute.xlu0 14
    %2091 = vperm.xlu0 %2090, %v64
    %v2092 = vpop.permute.xlu0 %2091
    %2094 = vset.pattern.permute.xlu0 14
    %2095 = vperm.xlu0 %2094, %v65
    %v2096 = vpop.permute.xlu0 %2095
    %2098 = vset.pattern.permute.xlu0 14
    %2099 = vperm.xlu0 %2098, %v66
    %v2100 = vpop.permute.xlu0 %2099
    %2102 = vset.pattern.permute.xlu0 14
    %2103 = vperm.xlu0 %2102, %v67
    %v2104 = vpop.permute.xlu0 %2103
    %2106 = vset.pattern.permute.xlu0 14
    %2107 = vperm.xlu0 %2106, %v68
    %v2108 = vpop.permute.xlu0 %2107
    %2110 = vset.pattern.permute.xlu0 14
    %2111 = vperm.xlu0 %2110, %v69
    %v2112 = vpop.permute.xlu0 %2111
    %2114 = vset.pattern.permute.xlu0 14
    %2115 = vperm.xlu0 %2114, %v70
    %v2116 = vpop.permute.xlu0 %2115
    %2118 = vset.pattern.permute.xlu0 14
    %2119 = vperm.xlu0 %2118, %v71
    %v2120 = vpop.permute.xlu0 %2119
    %2122 = vset.pattern.permute.xlu0 14
    %2123 = vperm.xlu0 %2122, %v72
    %v2124 = vpop.permute.xlu0 %2123
    %2126 = vset.pattern.permute.xlu0 14
    %2127 = vperm.xlu0 %2126, %v73
    %v2128 = vpop.permute.xlu0 %2127
    %2130 = vset.pattern.permute.xlu0 14
    %2131 = vperm.xlu0 %2130, %v74
    %v2132 = vpop.permute.xlu0 %2131
    %2134 = vset.pattern.permute.xlu0 14
    %2135 = vperm.xlu0 %2134, %v75
    %v2136 = vpop.permute.xlu0 %2135
    %2138 = vset.pattern.permute.xlu0 14
    %2139 = vperm.xlu0 %2138, %v76
    %v2140 = vpop.permute.xlu0 %2139
    %2142 = vset.pattern.permute.xlu0 14
    %2143 = vperm.xlu0 %2142, %v77
    %v2144 = vpop.permute.xlu0 %2143
    %v2146 = vmul.f32 %v2084, %v46
    %v2147 = vmul.f32 %v2088, %v47
    %v2148 = vmul.f32 %v2092, %v48
    %v2149 = vmul.f32 %v2096, %v49
    %v2150 = vmul.f32 %v2100, %v50
    %v2151 = vmul.f32 %v2104, %v51
    %v2152 = vmul.f32 %v2108, %v52
    %v2153 = vmul.f32 %v2112, %v53
    %v2154 = vmul.f32 %v2116, %v54
    %v2155 = vmul.f32 %v2120, %v55
    %v2156 = vmul.f32 %v2124, %v56
    %v2157 = vmul.f32 %v2128, %v57
    %v2158 = vmul.f32 %v2132, %v58
    %v2159 = vmul.f32 %v2136, %v59
    %v2160 = vmul.f32 %v2140, %v60
    %v2161 = vmul.f32 %v2144, %v61
    %2178 = vrot.lane.b32.xlu0 %v2146, 64
    %v2179 = vpop.permute.xlu0 %2178
    %2180 = vrot.lane.b32.xlu0 %v2147, 64
    %v2181 = vpop.permute.xlu0 %2180
    %2182 = vrot.lane.b32.xlu0 %v2148, 64
    %v2183 = vpop.permute.xlu0 %2182
    %2184 = vrot.lane.b32.xlu0 %v2149, 64
    %v2185 = vpop.permute.xlu0 %2184
    %2186 = vrot.lane.b32.xlu0 %v2150, 64
    %v2187 = vpop.permute.xlu0 %2186
    %2188 = vrot.lane.b32.xlu0 %v2151, 64
    %v2189 = vpop.permute.xlu0 %2188
    %2190 = vrot.lane.b32.xlu0 %v2152, 64
    %v2191 = vpop.permute.xlu0 %2190
    %2192 = vrot.lane.b32.xlu0 %v2153, 64
    %v2193 = vpop.permute.xlu0 %2192
    %2194 = vrot.lane.b32.xlu0 %v2154, 64
    %v2195 = vpop.permute.xlu0 %2194
    %2196 = vrot.lane.b32.xlu0 %v2155, 64
    %v2197 = vpop.permute.xlu0 %2196
    %2198 = vrot.lane.b32.xlu0 %v2156, 64
    %v2199 = vpop.permute.xlu0 %2198
    %2200 = vrot.lane.b32.xlu0 %v2157, 64
    %v2201 = vpop.permute.xlu0 %2200
    %2202 = vrot.lane.b32.xlu0 %v2158, 64
    %v2203 = vpop.permute.xlu0 %2202
    %2204 = vrot.lane.b32.xlu0 %v2159, 64
    %v2205 = vpop.permute.xlu0 %2204
    %2206 = vrot.lane.b32.xlu0 %v2160, 64
    %v2207 = vpop.permute.xlu0 %2206
    %2208 = vrot.lane.b32.xlu0 %v2161, 64
    %v2209 = vpop.permute.xlu0 %2208
    %2226 = vst.msk [vmem:[#allocation2 + $0x18] sm:$0xff] %vm496, %v2179
    %2227 = vst.msk [vmem:[#allocation2 + $0x38] sm:$0xff] %vm496, %v2181
    %2228 = vst.msk [vmem:[#allocation2 + $0x58] sm:$0xff] %vm496, %v2183
    %2229 = vst.msk [vmem:[#allocation2 + $0x78] sm:$0xff] %vm496, %v2185
    %2230 = vst.msk [vmem:[#allocation2 + $0x98] sm:$0xff] %vm496, %v2187
    %2231 = vst.msk [vmem:[#allocation2 + $0xb8] sm:$0xff] %vm496, %v2189
    %2232 = vst.msk [vmem:[#allocation2 + $0xd8] sm:$0xff] %vm496, %v2191
    %2233 = vst.msk [vmem:[#allocation2 + $0xf8] sm:$0xff] %vm496, %v2193
    %2234 = vst.msk [vmem:[#allocation2 + $0x118] sm:$0xff] %vm496, %v2195
    %2235 = vst.msk [vmem:[#allocation2 + $0x138] sm:$0xff] %vm496, %v2197
    %2236 = vst.msk [vmem:[#allocation2 + $0x158] sm:$0xff] %vm496, %v2199
    %2237 = vst.msk [vmem:[#allocation2 + $0x178] sm:$0xff] %vm496, %v2201
    %2238 = vst.msk [vmem:[#allocation2 + $0x198] sm:$0xff] %vm496, %v2203
    %2239 = vst.msk [vmem:[#allocation2 + $0x1b8] sm:$0xff] %vm496, %v2205
    %2240 = vst.msk [vmem:[#allocation2 + $0x1d8] sm:$0xff] %vm496, %v2207
    %2241 = vst.msk [vmem:[#allocation2 + $0x1f8] sm:$0xff] %vm496, %v2209
    %2242 = vset.pattern.permute.xlu0 15
    %2243 = vperm.xlu0 %2242, %v62
    %v2244 = vpop.permute.xlu0 %2243
    %2246 = vset.pattern.permute.xlu0 15
    %2247 = vperm.xlu0 %2246, %v63
    %v2248 = vpop.permute.xlu0 %2247
    %2250 = vset.pattern.permute.xlu0 15
    %2251 = vperm.xlu0 %2250, %v64
    %v2252 = vpop.permute.xlu0 %2251
    %2254 = vset.pattern.permute.xlu0 15
    %2255 = vperm.xlu0 %2254, %v65
    %v2256 = vpop.permute.xlu0 %2255
    %2258 = vset.pattern.permute.xlu0 15
    %2259 = vperm.xlu0 %2258, %v66
    %v2260 = vpop.permute.xlu0 %2259
    %2262 = vset.pattern.permute.xlu0 15
    %2263 = vperm.xlu0 %2262, %v67
    %v2264 = vpop.permute.xlu0 %2263
    %2266 = vset.pattern.permute.xlu0 15
    %2267 = vperm.xlu0 %2266, %v68
    %v2268 = vpop.permute.xlu0 %2267
    %2270 = vset.pattern.permute.xlu0 15
    %2271 = vperm.xlu0 %2270, %v69
    %v2272 = vpop.permute.xlu0 %2271
    %2274 = vset.pattern.permute.xlu0 15
    %2275 = vperm.xlu0 %2274, %v70
    %v2276 = vpop.permute.xlu0 %2275
    %2278 = vset.pattern.permute.xlu0 15
    %2279 = vperm.xlu0 %2278, %v71
    %v2280 = vpop.permute.xlu0 %2279
    %2282 = vset.pattern.permute.xlu0 15
    %2283 = vperm.xlu0 %2282, %v72
    %v2284 = vpop.permute.xlu0 %2283
    %2286 = vset.pattern.permute.xlu0 15
    %2287 = vperm.xlu0 %2286, %v73
    %v2288 = vpop.permute.xlu0 %2287
    %2290 = vset.pattern.permute.xlu0 15
    %2291 = vperm.xlu0 %2290, %v74
    %v2292 = vpop.permute.xlu0 %2291
    %2294 = vset.pattern.permute.xlu0 15
    %2295 = vperm.xlu0 %2294, %v75
    %v2296 = vpop.permute.xlu0 %2295
    %2298 = vset.pattern.permute.xlu0 15
    %2299 = vperm.xlu0 %2298, %v76
    %v2300 = vpop.permute.xlu0 %2299
    %2302 = vset.pattern.permute.xlu0 15
    %2303 = vperm.xlu0 %2302, %v77
    %v2304 = vpop.permute.xlu0 %2303
    %v2306 = vmul.f32 %v2244, %v46
    %v2307 = vmul.f32 %v2248, %v47
    %v2308 = vmul.f32 %v2252, %v48
    %v2309 = vmul.f32 %v2256, %v49
    %v2310 = vmul.f32 %v2260, %v50
    %v2311 = vmul.f32 %v2264, %v51
    %v2312 = vmul.f32 %v2268, %v52
    %v2313 = vmul.f32 %v2272, %v53
    %v2314 = vmul.f32 %v2276, %v54
    %v2315 = vmul.f32 %v2280, %v55
    %v2316 = vmul.f32 %v2284, %v56
    %v2317 = vmul.f32 %v2288, %v57
    %v2318 = vmul.f32 %v2292, %v58
    %v2319 = vmul.f32 %v2296, %v59
    %v2320 = vmul.f32 %v2300, %v60
    %v2321 = vmul.f32 %v2304, %v61
    %2338 = vrot.lane.b32.xlu0 %v2306, 96
    %v2339 = vpop.permute.xlu0 %2338
    %2340 = vrot.lane.b32.xlu0 %v2307, 96
    %v2341 = vpop.permute.xlu0 %2340
    %2342 = vrot.lane.b32.xlu0 %v2308, 96
    %v2343 = vpop.permute.xlu0 %2342
    %2344 = vrot.lane.b32.xlu0 %v2309, 96
    %v2345 = vpop.permute.xlu0 %2344
    %2346 = vrot.lane.b32.xlu0 %v2310, 96
    %v2347 = vpop.permute.xlu0 %2346
    %2348 = vrot.lane.b32.xlu0 %v2311, 96
    %v2349 = vpop.permute.xlu0 %2348
    %2350 = vrot.lane.b32.xlu0 %v2312, 96
    %v2351 = vpop.permute.xlu0 %2350
    %2352 = vrot.lane.b32.xlu0 %v2313, 96
    %v2353 = vpop.permute.xlu0 %2352
    %2354 = vrot.lane.b32.xlu0 %v2314, 96
    %v2355 = vpop.permute.xlu0 %2354
    %2356 = vrot.lane.b32.xlu0 %v2315, 96
    %v2357 = vpop.permute.xlu0 %2356
    %2358 = vrot.lane.b32.xlu0 %v2316, 96
    %v2359 = vpop.permute.xlu0 %2358
    %2360 = vrot.lane.b32.xlu0 %v2317, 96
    %v2361 = vpop.permute.xlu0 %2360
    %2362 = vrot.lane.b32.xlu0 %v2318, 96
    %v2363 = vpop.permute.xlu0 %2362
    %2364 = vrot.lane.b32.xlu0 %v2319, 96
    %v2365 = vpop.permute.xlu0 %2364
    %2366 = vrot.lane.b32.xlu0 %v2320, 96
    %v2367 = vpop.permute.xlu0 %2366
    %2368 = vrot.lane.b32.xlu0 %v2321, 96
    %v2369 = vpop.permute.xlu0 %2368
    %2386 = vst.msk [vmem:[#allocation2 + $0x18] sm:$0xff] %vm657, %v2339
    %2387 = vst.msk [vmem:[#allocation2 + $0x38] sm:$0xff] %vm657, %v2341
    %2388 = vst.msk [vmem:[#allocation2 + $0x58] sm:$0xff] %vm657, %v2343
    %2389 = vst.msk [vmem:[#allocation2 + $0x78] sm:$0xff] %vm657, %v2345
    %2390 = vst.msk [vmem:[#allocation2 + $0x98] sm:$0xff] %vm657, %v2347
    %2391 = vst.msk [vmem:[#allocation2 + $0xb8] sm:$0xff] %vm657, %v2349
    %2392 = vst.msk [vmem:[#allocation2 + $0xd8] sm:$0xff] %vm657, %v2351
    %2393 = vst.msk [vmem:[#allocation2 + $0xf8] sm:$0xff] %vm657, %v2353
    %2394 = vst.msk [vmem:[#allocation2 + $0x118] sm:$0xff] %vm657, %v2355
    %2395 = vst.msk [vmem:[#allocation2 + $0x138] sm:$0xff] %vm657, %v2357
    %2396 = vst.msk [vmem:[#allocation2 + $0x158] sm:$0xff] %vm657, %v2359
    %2397 = vst.msk [vmem:[#allocation2 + $0x178] sm:$0xff] %vm657, %v2361
    %2398 = vst.msk [vmem:[#allocation2 + $0x198] sm:$0xff] %vm657, %v2363
    %2399 = vst.msk [vmem:[#allocation2 + $0x1b8] sm:$0xff] %vm657, %v2365
    %2400 = vst.msk [vmem:[#allocation2 + $0x1d8] sm:$0xff] %vm657, %v2367
    %2401 = vst.msk [vmem:[#allocation2 + $0x1f8] sm:$0xff] %vm657, %v2369
    %v2402 = vld [vmem:[#allocation2] sm:$0xff]
    %v2403 = vld [vmem:[#allocation2 + $0x8] sm:$0xff]
    %v2404 = vld [vmem:[#allocation2 + $0x10] sm:$0xff]
    %v2405 = vld [vmem:[#allocation2 + $0x18] sm:$0xff]
    %v2406 = vld [vmem:[#allocation2 + $0x20] sm:$0xff]
    %v2407 = vld [vmem:[#allocation2 + $0x28] sm:$0xff]
    %v2408 = vld [vmem:[#allocation2 + $0x30] sm:$0xff]
    %v2409 = vld [vmem:[#allocation2 + $0x38] sm:$0xff]
    %v2410 = vld [vmem:[#allocation2 + $0x40] sm:$0xff]
    %v2411 = vld [vmem:[#allocation2 + $0x48] sm:$0xff]
    %v2412 = vld [vmem:[#allocation2 + $0x50] sm:$0xff]
    %v2413 = vld [vmem:[#allocation2 + $0x58] sm:$0xff]
    %v2414 = vld [vmem:[#allocation2 + $0x60] sm:$0xff]
    %v2415 = vld [vmem:[#allocation2 + $0x68] sm:$0xff]
    %v2416 = vld [vmem:[#allocation2 + $0x70] sm:$0xff]
    %v2417 = vld [vmem:[#allocation2 + $0x78] sm:$0xff]
    %v2418 = vld [vmem:[#allocation2 + $0x80] sm:$0xff]
    %v2419 = vld [vmem:[#allocation2 + $0x88] sm:$0xff]
    %v2420 = vld [vmem:[#allocation2 + $0x90] sm:$0xff]
    %v2421 = vld [vmem:[#allocation2 + $0x98] sm:$0xff]
    %v2422 = vld [vmem:[#allocation2 + $0xa0] sm:$0xff]
    %v2423 = vld [vmem:[#allocation2 + $0xa8] sm:$0xff]
    %v2424 = vld [vmem:[#allocation2 + $0xb0] sm:$0xff]
    %v2425 = vld [vmem:[#allocation2 + $0xb8] sm:$0xff]
    %v2426 = vld [vmem:[#allocation2 + $0xc0] sm:$0xff]
    %v2427 = vld [vmem:[#allocation2 + $0xc8] sm:$0xff]
    %v2428 = vld [vmem:[#allocation2 + $0xd0] sm:$0xff]
    %v2429 = vld [vmem:[#allocation2 + $0xd8] sm:$0xff]
    %v2430 = vld [vmem:[#allocation2 + $0xe0] sm:$0xff]
    %v2431 = vld [vmem:[#allocation2 + $0xe8] sm:$0xff]
    %v2432 = vld [vmem:[#allocation2 + $0xf0] sm:$0xff]
    %v2433 = vld [vmem:[#allocation2 + $0xf8] sm:$0xff]
    %v2434 = vld [vmem:[#allocation2 + $0x100] sm:$0xff]
    %v2435 = vld [vmem:[#allocation2 + $0x108] sm:$0xff]
    %v2436 = vld [vmem:[#allocation2 + $0x110] sm:$0xff]
    %v2437 = vld [vmem:[#allocation2 + $0x118] sm:$0xff]
    %v2438 = vld [vmem:[#allocation2 + $0x120] sm:$0xff]
    %v2439 = vld [vmem:[#allocation2 + $0x128] sm:$0xff]
    %v2440 = vld [vmem:[#allocation2 + $0x130] sm:$0xff]
    %v2441 = vld [vmem:[#allocation2 + $0x138] sm:$0xff]
    %v2442 = vld [vmem:[#allocation2 + $0x140] sm:$0xff]
    %v2443 = vld [vmem:[#allocation2 + $0x148] sm:$0xff]
    %v2444 = vld [vmem:[#allocation2 + $0x150] sm:$0xff]
    %v2445 = vld [vmem:[#allocation2 + $0x158] sm:$0xff]
    %v2446 = vld [vmem:[#allocation2 + $0x160] sm:$0xff]
    %v2447 = vld [vmem:[#allocation2 + $0x168] sm:$0xff]
    %v2448 = vld [vmem:[#allocation2 + $0x170] sm:$0xff]
    %v2449 = vld [vmem:[#allocation2 + $0x178] sm:$0xff]
    %v2450 = vld [vmem:[#allocation2 + $0x180] sm:$0xff]
    %v2451 = vld [vmem:[#allocation2 + $0x188] sm:$0xff]
    %v2452 = vld [vmem:[#allocation2 + $0x190] sm:$0xff]
    %v2453 = vld [vmem:[#allocation2 + $0x198] sm:$0xff]
    %v2454 = vld [vmem:[#allocation2 + $0x1a0] sm:$0xff]
    %v2455 = vld [vmem:[#allocation2 + $0x1a8] sm:$0xff]
    %v2456 = vld [vmem:[#allocation2 + $0x1b0] sm:$0xff]
    %v2457 = vld [vmem:[#allocation2 + $0x1b8] sm:$0xff]
    %v2458 = vld [vmem:[#allocation2 + $0x1c0] sm:$0xff]
    %v2459 = vld [vmem:[#allocation2 + $0x1c8] sm:$0xff]
    %v2460 = vld [vmem:[#allocation2 + $0x1d0] sm:$0xff]
    %v2461 = vld [vmem:[#allocation2 + $0x1d8] sm:$0xff]
    %v2462 = vld [vmem:[#allocation2 + $0x1e0] sm:$0xff]
    %v2463 = vld [vmem:[#allocation2 + $0x1e8] sm:$0xff]
    %v2464 = vld [vmem:[#allocation2 + $0x1f0] sm:$0xff]
    %v2465 = vld [vmem:[#allocation2 + $0x1f8] sm:$0xff]
    %v2466 = vpack.c.bf16 %v2406, %v2402
    %v2467 = vpack.c.bf16 %v2407, %v2403
    %v2468 = vpack.c.bf16 %v2408, %v2404
    %v2469 = vpack.c.bf16 %v2409, %v2405
    %v2470 = vpack.c.bf16 %v2414, %v2410
    %v2471 = vpack.c.bf16 %v2415, %v2411
    %v2472 = vpack.c.bf16 %v2416, %v2412
    %v2473 = vpack.c.bf16 %v2417, %v2413
    %v2474 = vpack.c.bf16 %v2422, %v2418
    %v2475 = vpack.c.bf16 %v2423, %v2419
    %v2476 = vpack.c.bf16 %v2424, %v2420
    %v2477 = vpack.c.bf16 %v2425, %v2421
    %v2478 = vpack.c.bf16 %v2430, %v2426
    %v2479 = vpack.c.bf16 %v2431, %v2427
    %v2480 = vpack.c.bf16 %v2432, %v2428
    %v2481 = vpack.c.bf16 %v2433, %v2429
    %v2482 = vpack.c.bf16 %v2438, %v2434
    %v2483 = vpack.c.bf16 %v2439, %v2435
    %v2484 = vpack.c.bf16 %v2440, %v2436
    %v2485 = vpack.c.bf16 %v2441, %v2437
    %v2486 = vpack.c.bf16 %v2446, %v2442
    %v2487 = vpack.c.bf16 %v2447, %v2443
    %v2488 = vpack.c.bf16 %v2448, %v2444
    %v2489 = vpack.c.bf16 %v2449, %v2445
    %v2490 = vpack.c.bf16 %v2454, %v2450
    %v2491 = vpack.c.bf16 %v2455, %v2451
    %v2492 = vpack.c.bf16 %v2456, %v2452
    %v2493 = vpack.c.bf16 %v2457, %v2453
    %v2494 = vpack.c.bf16 %v2462, %v2458
    %v2495 = vpack.c.bf16 %v2463, %v2459
    %v2496 = vpack.c.bf16 %v2464, %v2460
    %v2497 = vpack.c.bf16 %v2465, %v2461
    %v2498 = vld [vmem:[#allocation3] sm:$0xf]
    %v2499 = vld [vmem:[#allocation3 + $0x4] sm:$0xf]
    %v2500 = vld [vmem:[#allocation3 + $0x8] sm:$0xf]
    %v2501 = vld [vmem:[#allocation3 + $0xc] sm:$0xf]
    %v2502 = vld [vmem:[#allocation3 + $0x10] sm:$0xf]
    %v2503 = vld [vmem:[#allocation3 + $0x14] sm:$0xf]
    %v2504 = vld [vmem:[#allocation3 + $0x18] sm:$0xf]
    %v2505 = vld [vmem:[#allocation3 + $0x1c] sm:$0xf]
    %v2506 = vld [vmem:[#allocation3 + $0x20] sm:$0xf]
    %v2507 = vld [vmem:[#allocation3 + $0x24] sm:$0xf]
    %v2508 = vld [vmem:[#allocation3 + $0x28] sm:$0xf]
    %v2509 = vld [vmem:[#allocation3 + $0x2c] sm:$0xf]
    %v2510 = vld [vmem:[#allocation3 + $0x30] sm:$0xf]
    %v2511 = vld [vmem:[#allocation3 + $0x34] sm:$0xf]
    %v2512 = vld [vmem:[#allocation3 + $0x38] sm:$0xf]
    %v2513 = vld [vmem:[#allocation3 + $0x3c] sm:$0xf]
    %v2514 = vld [vmem:[#allocation3 + $0x40] sm:$0xf]
    %v2515 = vld [vmem:[#allocation3 + $0x44] sm:$0xf]
    %v2516 = vld [vmem:[#allocation3 + $0x48] sm:$0xf]
    %v2517 = vld [vmem:[#allocation3 + $0x4c] sm:$0xf]
    %v2518 = vld [vmem:[#allocation3 + $0x50] sm:$0xf]
    %v2519 = vld [vmem:[#allocation3 + $0x54] sm:$0xf]
    %v2520 = vld [vmem:[#allocation3 + $0x58] sm:$0xf]
    %v2521 = vld [vmem:[#allocation3 + $0x5c] sm:$0xf]
    %v2522 = vld [vmem:[#allocation3 + $0x60] sm:$0xf]
    %v2523 = vld [vmem:[#allocation3 + $0x64] sm:$0xf]
    %v2524 = vld [vmem:[#allocation3 + $0x68] sm:$0xf]
    %v2525 = vld [vmem:[#allocation3 + $0x6c] sm:$0xf]
    %v2526 = vld [vmem:[#allocation3 + $0x70] sm:$0xf]
    %v2527 = vld [vmem:[#allocation3 + $0x74] sm:$0xf]
    %v2528 = vld [vmem:[#allocation3 + $0x78] sm:$0xf]
    %v2529 = vld [vmem:[#allocation3 + $0x7c] sm:$0xf]
    %v2530 = vld [vmem:[#allocation3 + $0x80] sm:$0xf]
    %v2531 = vld [vmem:[#allocation3 + $0x84] sm:$0xf]
    %v2532 = vld [vmem:[#allocation3 + $0x88] sm:$0xf]
    %v2533 = vld [vmem:[#allocation3 + $0x8c] sm:$0xf]
    %v2534 = vld [vmem:[#allocation3 + $0x90] sm:$0xf]
    %v2535 = vld [vmem:[#allocation3 + $0x94] sm:$0xf]
    %v2536 = vld [vmem:[#allocation3 + $0x98] sm:$0xf]
    %v2537 = vld [vmem:[#allocation3 + $0x9c] sm:$0xf]
    %v2538 = vld [vmem:[#allocation3 + $0xa0] sm:$0xf]
    %v2539 = vld [vmem:[#allocation3 + $0xa4] sm:$0xf]
    %v2540 = vld [vmem:[#allocation3 + $0xa8] sm:$0xf]
    %v2541 = vld [vmem:[#allocation3 + $0xac] sm:$0xf]
    %v2542 = vld [vmem:[#allocation3 + $0xb0] sm:$0xf]
    %v2543 = vld [vmem:[#allocation3 + $0xb4] sm:$0xf]
    %v2544 = vld [vmem:[#allocation3 + $0xb8] sm:$0xf]
    %v2545 = vld [vmem:[#allocation3 + $0xbc] sm:$0xf]
    %v2546 = vld [vmem:[#allocation3 + $0xc0] sm:$0xf]
    %v2547 = vld [vmem:[#allocation3 + $0xc4] sm:$0xf]
    %v2548 = vld [vmem:[#allocation3 + $0xc8] sm:$0xf]
    %v2549 = vld [vmem:[#allocation3 + $0xcc] sm:$0xf]
    %v2550 = vld [vmem:[#allocation3 + $0xd0] sm:$0xf]
    %v2551 = vld [vmem:[#allocation3 + $0xd4] sm:$0xf]
    %v2552 = vld [vmem:[#allocation3 + $0xd8] sm:$0xf]
    %v2553 = vld [vmem:[#allocation3 + $0xdc] sm:$0xf]
    %v2554 = vld [vmem:[#allocation3 + $0xe0] sm:$0xf]
    %v2555 = vld [vmem:[#allocation3 + $0xe4] sm:$0xf]
    %v2556 = vld [vmem:[#allocation3 + $0xe8] sm:$0xf]
    %v2557 = vld [vmem:[#allocation3 + $0xec] sm:$0xf]
    %v2558 = vld [vmem:[#allocation3 + $0xf0] sm:$0xf]
    %v2559 = vld [vmem:[#allocation3 + $0xf4] sm:$0xf]
    %v2560 = vld [vmem:[#allocation3 + $0xf8] sm:$0xf]
    %v2561 = vld [vmem:[#allocation3 + $0xfc] sm:$0xf]
    %v2626 = vunpack.c.l.b16 %v2498
    %v2627 = vunpack.c.l.b16 %v2499
    %v2628 = vunpack.c.l.b16 %v2500
    %v2629 = vunpack.c.l.b16 %v2501
    %v2630 = vunpack.c.l.b16 %v2502
    %v2631 = vunpack.c.l.b16 %v2503
    %v2632 = vunpack.c.l.b16 %v2504
    %v2633 = vunpack.c.l.b16 %v2505
    %v2634 = vunpack.c.l.b16 %v2506
    %v2635 = vunpack.c.l.b16 %v2507
    %v2636 = vunpack.c.l.b16 %v2508
    %v2637 = vunpack.c.l.b16 %v2509
    %v2638 = vunpack.c.l.b16 %v2510
    %v2639 = vunpack.c.l.b16 %v2511
    %v2640 = vunpack.c.l.b16 %v2512
    %v2641 = vunpack.c.l.b16 %v2513
    %v2642 = vunpack.c.l.b16 %v2514
    %v2643 = vunpack.c.l.b16 %v2515
    %v2644 = vunpack.c.l.b16 %v2516
    %v2645 = vunpack.c.l.b16 %v2517
    %v2646 = vunpack.c.l.b16 %v2518
    %v2647 = vunpack.c.l.b16 %v2519
    %v2648 = vunpack.c.l.b16 %v2520
    %v2649 = vunpack.c.l.b16 %v2521
    %v2650 = vunpack.c.l.b16 %v2522
    %v2651 = vunpack.c.l.b16 %v2523
    %v2652 = vunpack.c.l.b16 %v2524
    %v2653 = vunpack.c.l.b16 %v2525
    %v2654 = vunpack.c.l.b16 %v2526
    %v2655 = vunpack.c.l.b16 %v2527
    %v2656 = vunpack.c.l.b16 %v2528
    %v2657 = vunpack.c.l.b16 %v2529
    %v2658 = vunpack.c.l.b16 %v2530
    %v2659 = vunpack.c.l.b16 %v2531
    %v2660 = vunpack.c.l.b16 %v2532
    %v2661 = vunpack.c.l.b16 %v2533
    %v2662 = vunpack.c.l.b16 %v2534
    %v2663 = vunpack.c.l.b16 %v2535
    %v2664 = vunpack.c.l.b16 %v2536
    %v2665 = vunpack.c.l.b16 %v2537
    %v2666 = vunpack.c.l.b16 %v2538
    %v2667 = vunpack.c.l.b16 %v2539
    %v2668 = vunpack.c.l.b16 %v2540
    %v2669 = vunpack.c.l.b16 %v2541
    %v2670 = vunpack.c.l.b16 %v2542
    %v2671 = vunpack.c.l.b16 %v2543
    %v2672 = vunpack.c.l.b16 %v2544
    %v2673 = vunpack.c.l.b16 %v2545
    %v2674 = vunpack.c.l.b16 %v2546
    %v2675 = vunpack.c.l.b16 %v2547
    %v2676 = vunpack.c.l.b16 %v2548
    %v2677 = vunpack.c.l.b16 %v2549
    %v2678 = vunpack.c.l.b16 %v2550
    %v2679 = vunpack.c.l.b16 %v2551
    %v2680 = vunpack.c.l.b16 %v2552
    %v2681 = vunpack.c.l.b16 %v2553
    %v2682 = vunpack.c.l.b16 %v2554
    %v2683 = vunpack.c.l.b16 %v2555
    %v2684 = vunpack.c.l.b16 %v2556
    %v2685 = vunpack.c.l.b16 %v2557
    %v2686 = vunpack.c.l.b16 %v2558
    %v2687 = vunpack.c.l.b16 %v2559
    %v2688 = vunpack.c.l.b16 %v2560
    %v2689 = vunpack.c.l.b16 %v2561
    %v2690 = vpack.c.b16 %v2627, %v2626
    %v2691 = vpack.c.b16 %v2629, %v2628
    %v2692 = vpack.c.b16 %v2631, %v2630
    %v2693 = vpack.c.b16 %v2633, %v2632
    %v2694 = vpack.c.b16 %v2635, %v2634
    %v2695 = vpack.c.b16 %v2637, %v2636
    %v2696 = vpack.c.b16 %v2639, %v2638
    %v2697 = vpack.c.b16 %v2641, %v2640
    %v2698 = vpack.c.b16 %v2643, %v2642
    %v2699 = vpack.c.b16 %v2645, %v2644
    %v2700 = vpack.c.b16 %v2647, %v2646
    %v2701 = vpack.c.b16 %v2649, %v2648
    %v2702 = vpack.c.b16 %v2651, %v2650
    %v2703 = vpack.c.b16 %v2653, %v2652
    %v2704 = vpack.c.b16 %v2655, %v2654
    %v2705 = vpack.c.b16 %v2657, %v2656
    %v2706 = vpack.c.b16 %v2659, %v2658
    %v2707 = vpack.c.b16 %v2661, %v2660
    %v2708 = vpack.c.b16 %v2663, %v2662
    %v2709 = vpack.c.b16 %v2665, %v2664
    %v2710 = vpack.c.b16 %v2667, %v2666
    %v2711 = vpack.c.b16 %v2669, %v2668
    %v2712 = vpack.c.b16 %v2671, %v2670
    %v2713 = vpack.c.b16 %v2673, %v2672
    %v2714 = vpack.c.b16 %v2675, %v2674
    %v2715 = vpack.c.b16 %v2677, %v2676
    %v2716 = vpack.c.b16 %v2679, %v2678
    %v2717 = vpack.c.b16 %v2681, %v2680
    %v2718 = vpack.c.b16 %v2683, %v2682
    %v2719 = vpack.c.b16 %v2685, %v2684
    %v2720 = vpack.c.b16 %v2687, %v2686
    %v2721 = vpack.c.b16 %v2689, %v2688
    %2754 = vmatprep.subr.bf16.mxu0 0
    %2755 = vmatpush1.bf16.msra.mxu0 %v2697
    %2756 = vmatprep.subr.bf16.mxu0 0
    %2757 = vmatpush1.bf16.msra.mxu0 %v2696
    %2758 = vmatprep.subr.bf16.mxu0 0
    %2759 = vmatpush1.bf16.msra.mxu0 %v2695
    %2760 = vmatprep.subr.bf16.mxu0 0
    %2761 = vmatpush1.bf16.msra.mxu0 %v2694
    %2762 = vmatprep.subr.bf16.mxu0 0
    %2763 = vmatpush1.bf16.msra.mxu0 %v2693
    %2764 = vmatprep.subr.bf16.mxu0 0
    %2765 = vmatpush1.bf16.msra.mxu0 %v2692
    %2766 = vmatprep.subr.bf16.mxu0 0
    %2767 = vmatpush1.bf16.msra.mxu0 %v2691
    %2768 = vmatprep.subr.bf16.mxu0 0
    %2769 = vmatpush1.bf16.msra.mxu0 %v2690
    %2770 = vmatprep.subr.bf16.mxu0 0
    %2771 = vmatpush2.bf16.msra.mxu0 %v2705
    %2772 = vmatprep.subr.bf16.mxu0 0
    %2773 = vmatpush2.bf16.msra.mxu0 %v2704
    %2774 = vmatprep.subr.bf16.mxu0 0
    %2775 = vmatpush2.bf16.msra.mxu0 %v2703
    %2776 = vmatprep.subr.bf16.mxu0 0
    %2777 = vmatpush2.bf16.msra.mxu0 %v2702
    %2778 = vmatprep.subr.bf16.mxu0 0
    %2779 = vmatpush2.bf16.msra.mxu0 %v2701
    %2780 = vmatprep.subr.bf16.mxu0 0
    %2781 = vmatpush2.bf16.msra.mxu0 %v2700
    %2782 = vmatprep.subr.bf16.mxu0 0
    %2783 = vmatpush2.bf16.msra.mxu0 %v2699
    %2784 = vmatprep.subr.bf16.mxu0 0
    %2785 = vmatpush2.bf16.msra.mxu0 %v2698
    %2786 = vmatprep.mubr.bf16.mxu0 %v2467
    %2787 = vmatmul.mubr.bf16.gmra.mxu0 %v2466
    %v2788 = vpop.f32.mrf.mxu0
    %v2789 = vadd.f32 0.0, %v2788
    %v2790 = vpop.f32.mrf.mxu0
    %v2791 = vpop.f32.mrf.mxu0
    %v2792 = vadd.f32 0.0, %v2791
    %v2793 = vpop.f32.mrf.mxu0
    %2794 = vmatprep.mubr.bf16.mxu0 %v2471
    %2795 = vmatmul.mubr.bf16.gmra.mxu0 %v2470
    %v2796 = vpop.f32.mrf.mxu0
    %v2797 = vadd.f32 0.0, %v2796
    %v2798 = vpop.f32.mrf.mxu0
    %v2799 = vpop.f32.mrf.mxu0
    %v2800 = vadd.f32 0.0, %v2799
    %v2801 = vpop.f32.mrf.mxu0
    %2802 = vmatprep.mubr.bf16.mxu0 %v2475
    %2803 = vmatmul.mubr.bf16.gmra.mxu0 %v2474
    %v2804 = vpop.f32.mrf.mxu0
    %v2805 = vadd.f32 0.0, %v2804
    %v2806 = vpop.f32.mrf.mxu0
    %v2807 = vpop.f32.mrf.mxu0
    %v2808 = vadd.f32 0.0, %v2807
    %v2809 = vpop.f32.mrf.mxu0
    %2810 = vmatprep.mubr.bf16.mxu0 %v2479
    %2811 = vmatmul.mubr.bf16.gmra.mxu0 %v2478
    %v2812 = vpop.f32.mrf.mxu0
    %v2813 = vadd.f32 0.0, %v2812
    %v2814 = vpop.f32.mrf.mxu0
    %v2815 = vpop.f32.mrf.mxu0
    %v2816 = vadd.f32 0.0, %v2815
    %v2817 = vpop.f32.mrf.mxu0
    %2818 = vmatprep.mubr.bf16.mxu0 %v2483
    %2819 = vmatmul.mubr.bf16.gmra.mxu0 %v2482
    %v2820 = vpop.f32.mrf.mxu0
    %v2821 = vadd.f32 0.0, %v2820
    %v2822 = vpop.f32.mrf.mxu0
    %v2823 = vpop.f32.mrf.mxu0
    %v2824 = vadd.f32 0.0, %v2823
    %v2825 = vpop.f32.mrf.mxu0
    %2826 = vmatprep.mubr.bf16.mxu0 %v2487
    %2827 = vmatmul.mubr.bf16.gmra.mxu0 %v2486
    %v2828 = vpop.f32.mrf.mxu0
    %v2829 = vadd.f32 0.0, %v2828
    %v2830 = vpop.f32.mrf.mxu0
    %v2831 = vpop.f32.mrf.mxu0
    %v2832 = vadd.f32 0.0, %v2831
    %v2833 = vpop.f32.mrf.mxu0
    %2834 = vmatprep.mubr.bf16.mxu0 %v2491
    %2835 = vmatmul.mubr.bf16.gmra.mxu0 %v2490
    %v2836 = vpop.f32.mrf.mxu0
    %v2837 = vadd.f32 0.0, %v2836
    %v2838 = vpop.f32.mrf.mxu0
    %v2839 = vpop.f32.mrf.mxu0
    %v2840 = vadd.f32 0.0, %v2839
    %v2841 = vpop.f32.mrf.mxu0
    %2842 = vmatprep.mubr.bf16.mxu0 %v2495
    %2843 = vmatmul.mubr.bf16.gmra.mxu0 %v2494
    %v2844 = vpop.f32.mrf.mxu0
    %v2845 = vadd.f32 0.0, %v2844
    %v2846 = vpop.f32.mrf.mxu0
    %v2847 = vpop.f32.mrf.mxu0
    %v2848 = vadd.f32 0.0, %v2847
    %v2849 = vpop.f32.mrf.mxu0
    %2850 = vdwg.mxu0
    %2851 = vmatprep.subr.bf16.mxu0 0
    %2852 = vmatpush1.bf16.msra.mxu0 %v2713
    %2853 = vmatprep.subr.bf16.mxu0 0
    %2854 = vmatpush1.bf16.msra.mxu0 %v2712
    %2855 = vmatprep.subr.bf16.mxu0 0
    %2856 = vmatpush1.bf16.msra.mxu0 %v2711
    %2857 = vmatprep.subr.bf16.mxu0 0
    %2858 = vmatpush1.bf16.msra.mxu0 %v2710
    %2859 = vmatprep.subr.bf16.mxu0 0
    %2860 = vmatpush1.bf16.msra.mxu0 %v2709
    %2861 = vmatprep.subr.bf16.mxu0 0
    %2862 = vmatpush1.bf16.msra.mxu0 %v2708
    %2863 = vmatprep.subr.bf16.mxu0 0
    %2864 = vmatpush1.bf16.msra.mxu0 %v2707
    %2865 = vmatprep.subr.bf16.mxu0 0
    %2866 = vmatpush1.bf16.msra.mxu0 %v2706
    %2867 = vmatprep.subr.bf16.mxu0 0
    %2868 = vmatpush2.bf16.msra.mxu0 %v2721
    %2869 = vmatprep.subr.bf16.mxu0 0
    %2870 = vmatpush2.bf16.msra.mxu0 %v2720
    %2871 = vmatprep.subr.bf16.mxu0 0
    %2872 = vmatpush2.bf16.msra.mxu0 %v2719
    %2873 = vmatprep.subr.bf16.mxu0 0
    %2874 = vmatpush2.bf16.msra.mxu0 %v2718
    %2875 = vmatprep.subr.bf16.mxu0 0
    %2876 = vmatpush2.bf16.msra.mxu0 %v2717
    %2877 = vmatprep.subr.bf16.mxu0 0
    %2878 = vmatpush2.bf16.msra.mxu0 %v2716
    %2879 = vmatprep.subr.bf16.mxu0 0
    %2880 = vmatpush2.bf16.msra.mxu0 %v2715
    %2881 = vmatprep.subr.bf16.mxu0 0
    %2882 = vmatpush2.bf16.msra.mxu0 %v2714
    %2883 = vmatprep.mubr.bf16.mxu0 %v2469
    %2884 = vmatmul.mubr.bf16.gmra.mxu0 %v2468
    %v2885 = vpop.f32.mrf.mxu0
    %v2886 = vadd.f32 %v2789, %v2885
    %v2887 = vpop.f32.mrf.mxu0
    %v2888 = vpop.f32.mrf.mxu0
    %v2889 = vadd.f32 %v2792, %v2888
    %v2890 = vpop.f32.mrf.mxu0
    %2891 = vmatprep.mubr.bf16.mxu0 %v2473
    %2892 = vmatmul.mubr.bf16.gmra.mxu0 %v2472
    %v2893 = vpop.f32.mrf.mxu0
    %v2894 = vadd.f32 %v2797, %v2893
    %v2895 = vpop.f32.mrf.mxu0
    %v2896 = vpop.f32.mrf.mxu0
    %v2897 = vadd.f32 %v2800, %v2896
    %v2898 = vpop.f32.mrf.mxu0
    %2899 = vmatprep.mubr.bf16.mxu0 %v2477
    %2900 = vmatmul.mubr.bf16.gmra.mxu0 %v2476
    %v2901 = vpop.f32.mrf.mxu0
    %v2902 = vadd.f32 %v2805, %v2901
    %v2903 = vpop.f32.mrf.mxu0
    %v2904 = vpop.f32.mrf.mxu0
    %v2905 = vadd.f32 %v2808, %v2904
    %v2906 = vpop.f32.mrf.mxu0
    %2907 = vmatprep.mubr.bf16.mxu0 %v2481
    %2908 = vmatmul.mubr.bf16.gmra.mxu0 %v2480
    %v2909 = vpop.f32.mrf.mxu0
    %v2910 = vadd.f32 %v2813, %v2909
    %v2911 = vpop.f32.mrf.mxu0
    %v2912 = vpop.f32.mrf.mxu0
    %v2913 = vadd.f32 %v2816, %v2912
    %v2914 = vpop.f32.mrf.mxu0
    %2915 = vmatprep.mubr.bf16.mxu0 %v2485
    %2916 = vmatmul.mubr.bf16.gmra.mxu0 %v2484
    %v2917 = vpop.f32.mrf.mxu0
    %v2918 = vadd.f32 %v2821, %v2917
    %v2919 = vpop.f32.mrf.mxu0
    %v2920 = vpop.f32.mrf.mxu0
    %v2921 = vadd.f32 %v2824, %v2920
    %v2922 = vpop.f32.mrf.mxu0
    %2923 = vmatprep.mubr.bf16.mxu0 %v2489
    %2924 = vmatmul.mubr.bf16.gmra.mxu0 %v2488
    %v2925 = vpop.f32.mrf.mxu0
    %v2926 = vadd.f32 %v2829, %v2925
    %v2927 = vpop.f32.mrf.mxu0
    %v2928 = vpop.f32.mrf.mxu0
    %v2929 = vadd.f32 %v2832, %v2928
    %v2930 = vpop.f32.mrf.mxu0
    %2931 = vmatprep.mubr.bf16.mxu0 %v2493
    %2932 = vmatmul.mubr.bf16.gmra.mxu0 %v2492
    %v2933 = vpop.f32.mrf.mxu0
    %v2934 = vadd.f32 %v2837, %v2933
    %v2935 = vpop.f32.mrf.mxu0
    %v2936 = vpop.f32.mrf.mxu0
    %v2937 = vadd.f32 %v2840, %v2936
    %v2938 = vpop.f32.mrf.mxu0
    %2939 = vmatprep.mubr.bf16.mxu0 %v2497
    %2940 = vmatmul.mubr.bf16.gmra.mxu0 %v2496
    %v2941 = vpop.f32.mrf.mxu0
    %v2942 = vadd.f32 %v2845, %v2941
    %v2943 = vpop.f32.mrf.mxu0
    %v2944 = vpop.f32.mrf.mxu0
    %v2945 = vadd.f32 %v2848, %v2944
    %v2946 = vpop.f32.mrf.mxu0
    %2947 = vdwg.mxu0
    %v2948 = vpack.c.bf16 %v2889, %v2886
    %v2949 = vpack.c.bf16 %v2897, %v2894
    %v2950 = vpack.c.bf16 %v2905, %v2902
    %v2951 = vpack.c.bf16 %v2913, %v2910
    %v2952 = vpack.c.bf16 %v2921, %v2918
    %v2953 = vpack.c.bf16 %v2929, %v2926
    %v2954 = vpack.c.bf16 %v2937, %v2934
    %v2955 = vpack.c.bf16 %v2945, %v2942
    %v2964 = vunpack.c.l.b16 %v2948
    %v2965 = vunpack.c.h.b16 %v2948
    %v2966 = vunpack.c.l.b16 %v2949
    %v2967 = vunpack.c.h.b16 %v2949
    %v2968 = vunpack.c.l.b16 %v2950
    %v2969 = vunpack.c.h.b16 %v2950
    %v2970 = vunpack.c.l.b16 %v2951
    %v2971 = vunpack.c.h.b16 %v2951
    %v2972 = vunpack.c.l.b16 %v2952
    %v2973 = vunpack.c.h.b16 %v2952
    %v2974 = vunpack.c.l.b16 %v2953
    %v2975 = vunpack.c.h.b16 %v2953
    %v2976 = vunpack.c.l.b16 %v2954
    %v2977 = vunpack.c.h.b16 %v2954
    %v2978 = vunpack.c.l.b16 %v2955
    %v2979 = vunpack.c.h.b16 %v2955
    %v2980 = vpack.c.b16 %v2964, %v2964
    %v2981 = vpack.c.b16 %v2965, %v2965
    %v2982 = vpack.c.b16 %v2966, %v2966
    %v2983 = vpack.c.b16 %v2967, %v2967
    %v2984 = vpack.c.b16 %v2968, %v2968
    %v2985 = vpack.c.b16 %v2969, %v2969
    %v2986 = vpack.c.b16 %v2970, %v2970
    %v2987 = vpack.c.b16 %v2971, %v2971
    %v2988 = vpack.c.b16 %v2972, %v2972
    %v2989 = vpack.c.b16 %v2973, %v2973
    %v2990 = vpack.c.b16 %v2974, %v2974
    %v2991 = vpack.c.b16 %v2975, %v2975
    %v2992 = vpack.c.b16 %v2976, %v2976
    %v2993 = vpack.c.b16 %v2977, %v2977
    %v2994 = vpack.c.b16 %v2978, %v2978
    %v2995 = vpack.c.b16 %v2979, %v2979
    %3012 = vst [vmem:[#allocation6] sm:$0xf] %v2980
    %3013 = vst [vmem:[#allocation6 + $0x4] sm:$0xf] %v2981
    %3014 = vst [vmem:[#allocation6 + $0x8] sm:$0xf] %v2982
    %3015 = vst [vmem:[#allocation6 + $0xc] sm:$0xf] %v2983
    %3016 = vst [vmem:[#allocation6 + $0x10] sm:$0xf] %v2984
    %3017 = vst [vmem:[#allocation6 + $0x14] sm:$0xf] %v2985
    %3018 = vst [vmem:[#allocation6 + $0x18] sm:$0xf] %v2986
    %3019 = vst [vmem:[#allocation6 + $0x1c] sm:$0xf] %v2987
    %3020 = vst [vmem:[#allocation6 + $0x20] sm:$0xf] %v2988
    %3021 = vst [vmem:[#allocation6 + $0x24] sm:$0xf] %v2989
    %3022 = vst [vmem:[#allocation6 + $0x28] sm:$0xf] %v2990
    %3023 = vst [vmem:[#allocation6 + $0x2c] sm:$0xf] %v2991
    %3024 = vst [vmem:[#allocation6 + $0x30] sm:$0xf] %v2992
    %3025 = vst [vmem:[#allocation6 + $0x34] sm:$0xf] %v2993
    %3026 = vst [vmem:[#allocation6 + $0x38] sm:$0xf] %v2994
    %3027 = vst [vmem:[#allocation6 + $0x3c] sm:$0xf] %v2995
    // Predicated region
    $region18: #{tpu_custom_call.1} parent=1 // pred_check
      _
    $region19: #{tpu_custom_call.1} parent=1 // pred_check_branch
      %3029 = sbr.rel (0) target = $region21
    $region20: #{tpu_custom_call.1} parent=1 // pred_region
      %s3031 = ssub.s32 1024, 1024
      %3032 = vsyncadd [#allocation5], %s3031
      %s3033 = sshll.u32 [#allocation6], 4
      %s3034 = int_to_ptr.vmem [resolvable:$true] %s3033
      %3039 = dma.vmem_to_hbm [thread:$0]  %s3034, 1024, %s3, [#allocation5], 64, 64, 4
    $region21: #{tpu_custom_call.1} parent=1 // pred_fallthru
      _
    // Predicated region
    $region22: #{tpu_custom_call.1} parent=1 // pred_check
      _
    $region23: #{tpu_custom_call.1} parent=1 // pred_check_branch
      %3041 = sbr.rel (0) target = $region25
    $region24: #{tpu_custom_call.1} parent=1 // pred_region
      %3042 = dma.done [#allocation5], 1024
    $region25: #{tpu_custom_call.1} parent=1 // pred_fallthru
      _
    %3043 = vsyncpa [#allocation4], 1
    %3044 = vsyncpa [#allocation5], 1

</llo_original>
